<compile_context>
chip_gen: v7x
topology: tpu7x:2x2x1
jax: 0.10.0
libtpu: 0.0.40
codegen_flags: <defaults>
</compile_context>

<pallas_src>
import jax
import jax.numpy as jnp
from jax.experimental import pallas as pl
from jax.experimental.pallas import tpu as pltpu


def _round_up(x, m):
    return ((x + m - 1) // m) * m


def _softplus(x):
    # numerically-stable softplus == log1p(exp(x)) without overflow for large x
    return jnp.log1p(jnp.exp(-jnp.abs(x))) + jnp.maximum(x, 0.0)


def bayesian_conv2d_pallas(x, w_mu, w_logsigma2, w_eps,
                           b_mu, b_logsigma2, b_eps,
                           *, stride=1, padding=1, dilation=1):
    """Forward of BayesianConv2d with sample=True.

    x:   (N, C, H, W)        float32, NCHW
    w_*: (OC, C, KH, KW)     float32, OIHW
    b_*: (OC,)               float32
    returns (N, OC, H_out, W_out) float32, NCHW
    """
    assert dilation == 1, "dilation=1 only (module default)"
    N, C, H, W = x.shape
    OC, Cw, KH, KW = w_mu.shape
    assert C == Cw
    f32 = jnp.float32

    H_pad, W_pad = H + 2 * padding, W + 2 * padding
    H_out = (H + 2 * padding - KH) // stride + 1
    W_out = (W + 2 * padding - KW) // stride + 1
    Ho_s1 = H_pad - KH + 1            # stride-1 output rows computed by the kernel
    T = KH * KW
    L = H_pad * W_pad                 # flat padded spatial extent per image

    OC_p = _round_up(OC, 8)           # output sublane axis
    C_p = _round_up(C + 1, 8)         # +1 spare channel row carries the bias
    M_out = Ho_s1 * W_pad             # flat stride-1 output width per image
    M_out_p = _round_up(M_out, 128)   # lane-dense -> unmasked full-width stores
    s_max = (KH - 1) * W_pad + (KW - 1)
    L_p = _round_up(s_max + M_out_p, 128)   # every shifted in-kernel slice stays in-bounds

    # ---- parameter sampling + packing (plain JAX; tiny tensors) -------------
    weight = w_mu.astype(f32) + w_eps.astype(f32) * jnp.sqrt(_softplus(w_logsigma2.astype(f32)))
    bias = b_mu.astype(f32) + b_eps.astype(f32) * jnp.sqrt(_softplus(b_logsigma2.astype(f32)))
    # taps laid out (t, oc, c) with t = kh*KW + kw
    w_taps = weight.transpose(2, 3, 0, 1).reshape(T, OC, C)
    w_taps = jnp.pad(w_taps, ((0, 0), (0, OC_p - OC), (0, C_p - C)))
    w_taps = w_taps.at[0, :OC, C].set(bias)          # bias folded into tap 0

    # ---- activation slab: one cheap pad + reshape (no 9x im2col expansion) --
    x_pad = jnp.pad(x.astype(f32),
                    ((0, 0), (0, 0), (padding, padding), (padding, padding)))
    x_flat = x_pad.reshape(N, C, L)
    bias_row = jnp.ones((N, 1, L), f32)               # multiplies the folded bias
    zero_rows = jnp.zeros((N, C_p - C - 1, L), f32)
    x_slab = jnp.concatenate([x_flat, bias_row, zero_rows], axis=1)   # (N, C_p, L)
    x_slab = jnp.pad(x_slab, ((0, 0), (0, 0), (0, L_p - L)))          # (N, C_p, L_p)

    shifts = tuple(kh * W_pad + kw for kh in range(KH) for kw in range(KW))

    # ---- fused im2col + matmul kernel (one image per grid step) -------------
    def conv_kernel(w_ref, x_ref, o_ref):
        # w_ref: (T, OC_p, C_p) resident;  x_ref: (C_p, L_p) this image;
        # o_ref: (OC_p, M_out_p) lane-dense.
        acc = jnp.dot(w_ref[0], x_ref[:, shifts[0]:shifts[0] + M_out_p],
                      preferred_element_type=jnp.float32)
        for t in range(1, T):
            s = shifts[t]
            acc = acc + jnp.dot(w_ref[t], x_ref[:, s:s + M_out_p],
                                preferred_element_type=jnp.float32)
        o_ref[...] = acc

    out_raw = pl.pallas_call(
        conv_kernel,
        out_shape=jax.ShapeDtypeStruct((N, OC_p, M_out_p), f32),
        grid=(N,),
        in_specs=[
            pl.BlockSpec((T, OC_p, C_p), lambda n: (0, 0, 0)),    # sampled weights (resident)
            pl.BlockSpec((None, C_p, L_p), lambda n: (n, 0, 0)),  # activation slab (streamed)
        ],
        out_specs=pl.BlockSpec((None, OC_p, M_out_p), lambda n: (n, 0, 0)),
        compiler_params=pltpu.CompilerParams(
            dimension_semantics=("parallel",),        # megacore across images on v7x
            vmem_limit_bytes=48 * 1024 * 1024),
        cost_estimate=pl.CostEstimate(
            flops=2 * N * T * OC_p * C_p * M_out_p,
            transcendentals=0,
            bytes_accessed=4 * (N * C_p * L_p + T * OC_p * C_p + N * OC_p * M_out_p)),
    )(w_taps, x_slab)

    # ---- epilogue: drop pad rows / garbage columns; already NCHW ------------
    out = out_raw[:, :OC, :M_out].reshape(N, OC, Ho_s1, W_pad)
    out = out[:, :, ::stride, ::stride][:, :, :H_out, :W_out]
    return out


# ----------------------------- reference (plain JAX) -------------------------
def _reference(x, w_mu, w_logsigma2, w_eps, b_mu, b_logsigma2, b_eps,
               stride=1, padding=1):
    weight = w_mu + w_eps * jnp.sqrt(_softplus(w_logsigma2))
    bias = b_mu + b_eps * jnp.sqrt(_softplus(b_logsigma2))
    out = jax.lax.conv_general_dilated(
        x, weight, window_strides=(stride, stride),
        padding=((padding, padding), (padding, padding)),
        dimension_numbers=("NCHW", "OIHW", "NCHW"))
    return out + bias[None, :, None, None]


if __name__ == "__main__":
    # Small shapes consistent with the module: in_channels=4, out_channels=8,
    # kernel_size=3, stride=1, padding=1.
    N, C, OC, H, W, KH, KW = 2, 4, 8, 16, 16, 3, 3

    key = jax.random.PRNGKey(0)
    k = jax.random.split(key, 8)

    x = jax.random.normal(k[0], (N, C, H, W), jnp.float32)

    # Deterministic parameter init mirroring reset_parameters():
    stdv = 1.0 / jnp.sqrt(jnp.float32(C))
    w_mu = stdv * jax.random.normal(k[1], (OC, C, KH, KW), jnp.float32)
    w_logsigma2 = -9.0 + 0.001 * jax.random.normal(k[2], (OC, C, KH, KW), jnp.float32)
    b_mu = 0.01 * jax.random.normal(k[3], (OC,), jnp.float32)
    b_logsigma2 = -9.0 + 0.001 * jax.random.normal(k[4], (OC,), jnp.float32)

    # Reparameterization noise (torch.empty(...).normal_(0,1) equivalents),
    # drawn once here so the Pallas kernel and the reference share the sample.
    w_eps = jax.random.normal(k[5], (OC, C, KH, KW), jnp.float32)
    b_eps = jax.random.normal(k[6], (OC,), jnp.float32)

    out = bayesian_conv2d_pallas(x, w_mu, w_logsigma2, w_eps,
                                 b_mu, b_logsigma2, b_eps,
                                 stride=1, padding=1, dilation=1)
    out = jax.block_until_ready(out)

    ref = _reference(x, w_mu, w_logsigma2, w_eps, b_mu, b_logsigma2, b_eps)
    assert out.shape == (N, OC, H, W)
    err = float(jnp.max(jnp.abs(out - ref)))
    assert err < 1e-4, f"mismatch vs reference conv: {err}"

    print("KERNEL_OK")
</pallas_src>

<mosaic_0001>
module attributes {stable_mosaic.version = 11 : i64} {
  func.func @conv_kernel(%arg0: i32, %arg1: memref<9x8x8xf32, #tpu.memory_space<vmem>>, %arg2: memref<1x8x512xf32, #tpu.memory_space<vmem>>, %arg3: memref<1x8x384xf32, #tpu.memory_space<vmem>>) attributes {dimension_semantics = [#tpu.dimension_semantics<parallel>], iteration_bounds = array<i64: 2>, scalar_prefetch = 0 : i64, scratch_operands = 0 : i64, tpu.core_type = #tpu.core_type<tc>, window_params = [{pipeline_mode = #tpu.pipeline_mode<synchronous>, transform_indices = @transform_0, window_bounds = array<i64: 9, 8, 8>}, {transform_indices = @transform_1, window_bounds = array<i64: 1, 8, 512>}, {transform_indices = @transform_2, window_bounds = array<i64: 1, 8, 384>}]} {
    %c0 = arith.constant 0 : index
    %c0_0 = arith.constant 0 : index
    %c0_1 = arith.constant 0 : index
    %0 = vector.load %arg1[%c0, %c0_0, %c0_1] : memref<9x8x8xf32, #tpu.memory_space<vmem>>, vector<1x8x8xf32>
    %1 = vector.shape_cast %0 : vector<1x8x8xf32> to vector<8x8xf32>
    %c0_2 = arith.constant 0 : index
    %c0_3 = arith.constant 0 : index
    %c0_4 = arith.constant 0 : index
    %2 = vector.load %arg2[%c0_2, %c0_3, %c0_4] : memref<1x8x512xf32, #tpu.memory_space<vmem>>, vector<1x8x384xf32>
    %3 = vector.shape_cast %2 : vector<1x8x384xf32> to vector<8x384xf32>
    %cst = arith.constant dense<0.000000e+00> : vector<8x384xf32>
    %4 = tpu.matmul %1, %3, %cst {dimension_numbers = #tpu.dot_dimension_numbers<[1], [0], [0], [1], [0, 0, 1, 1], [], []>} : vector<8x8xf32>, vector<8x384xf32>, vector<8x384xf32> -> vector<8x384xf32>
    %c1 = arith.constant 1 : index
    %c0_5 = arith.constant 0 : index
    %c0_6 = arith.constant 0 : index
    %5 = vector.load %arg1[%c1, %c0_5, %c0_6] : memref<9x8x8xf32, #tpu.memory_space<vmem>>, vector<1x8x8xf32>
    %6 = vector.shape_cast %5 : vector<1x8x8xf32> to vector<8x8xf32>
    %c0_7 = arith.constant 0 : index
    %c0_8 = arith.constant 0 : index
    %c1_9 = arith.constant 1 : index
    %7 = vector.load %arg2[%c0_7, %c0_8, %c1_9] : memref<1x8x512xf32, #tpu.memory_space<vmem>>, vector<1x8x384xf32>
    %8 = vector.shape_cast %7 : vector<1x8x384xf32> to vector<8x384xf32>
    %cst_10 = arith.constant dense<0.000000e+00> : vector<8x384xf32>
    %9 = tpu.matmul %6, %8, %cst_10 {dimension_numbers = #tpu.dot_dimension_numbers<[1], [0], [0], [1], [0, 0, 1, 1], [], []>} : vector<8x8xf32>, vector<8x384xf32>, vector<8x384xf32> -> vector<8x384xf32>
    %10 = arith.addf %4, %9 : vector<8x384xf32>
    %c2 = arith.constant 2 : index
    %c0_11 = arith.constant 0 : index
    %c0_12 = arith.constant 0 : index
    %11 = vector.load %arg1[%c2, %c0_11, %c0_12] : memref<9x8x8xf32, #tpu.memory_space<vmem>>, vector<1x8x8xf32>
    %12 = vector.shape_cast %11 : vector<1x8x8xf32> to vector<8x8xf32>
    %c0_13 = arith.constant 0 : index
    %c0_14 = arith.constant 0 : index
    %c2_15 = arith.constant 2 : index
    %13 = vector.load %arg2[%c0_13, %c0_14, %c2_15] : memref<1x8x512xf32, #tpu.memory_space<vmem>>, vector<1x8x384xf32>
    %14 = vector.shape_cast %13 : vector<1x8x384xf32> to vector<8x384xf32>
    %cst_16 = arith.constant dense<0.000000e+00> : vector<8x384xf32>
    %15 = tpu.matmul %12, %14, %cst_16 {dimension_numbers = #tpu.dot_dimension_numbers<[1], [0], [0], [1], [0, 0, 1, 1], [], []>} : vector<8x8xf32>, vector<8x384xf32>, vector<8x384xf32> -> vector<8x384xf32>
    %16 = arith.addf %10, %15 : vector<8x384xf32>
    %c3 = arith.constant 3 : index
    %c0_17 = arith.constant 0 : index
    %c0_18 = arith.constant 0 : index
    %17 = vector.load %arg1[%c3, %c0_17, %c0_18] : memref<9x8x8xf32, #tpu.memory_space<vmem>>, vector<1x8x8xf32>
    %18 = vector.shape_cast %17 : vector<1x8x8xf32> to vector<8x8xf32>
    %c0_19 = arith.constant 0 : index
    %c0_20 = arith.constant 0 : index
    %c18 = arith.constant 18 : index
    %19 = vector.load %arg2[%c0_19, %c0_20, %c18] : memref<1x8x512xf32, #tpu.memory_space<vmem>>, vector<1x8x384xf32>
    %20 = vector.shape_cast %19 : vector<1x8x384xf32> to vector<8x384xf32>
    %cst_21 = arith.constant dense<0.000000e+00> : vector<8x384xf32>
    %21 = tpu.matmul %18, %20, %cst_21 {dimension_numbers = #tpu.dot_dimension_numbers<[1], [0], [0], [1], [0, 0, 1, 1], [], []>} : vector<8x8xf32>, vector<8x384xf32>, vector<8x384xf32> -> vector<8x384xf32>
    %22 = arith.addf %16, %21 : vector<8x384xf32>
    %c4 = arith.constant 4 : index
    %c0_22 = arith.constant 0 : index
    %c0_23 = arith.constant 0 : index
    %23 = vector.load %arg1[%c4, %c0_22, %c0_23] : memref<9x8x8xf32, #tpu.memory_space<vmem>>, vector<1x8x8xf32>
    %24 = vector.shape_cast %23 : vector<1x8x8xf32> to vector<8x8xf32>
    %c0_24 = arith.constant 0 : index
    %c0_25 = arith.constant 0 : index
    %c19 = arith.constant 19 : index
    %25 = vector.load %arg2[%c0_24, %c0_25, %c19] : memref<1x8x512xf32, #tpu.memory_space<vmem>>, vector<1x8x384xf32>
    %26 = vector.shape_cast %25 : vector<1x8x384xf32> to vector<8x384xf32>
    %cst_26 = arith.constant dense<0.000000e+00> : vector<8x384xf32>
    %27 = tpu.matmul %24, %26, %cst_26 {dimension_numbers = #tpu.dot_dimension_numbers<[1], [0], [0], [1], [0, 0, 1, 1], [], []>} : vector<8x8xf32>, vector<8x384xf32>, vector<8x384xf32> -> vector<8x384xf32>
    %28 = arith.addf %22, %27 : vector<8x384xf32>
    %c5 = arith.constant 5 : index
    %c0_27 = arith.constant 0 : index
    %c0_28 = arith.constant 0 : index
    %29 = vector.load %arg1[%c5, %c0_27, %c0_28] : memref<9x8x8xf32, #tpu.memory_space<vmem>>, vector<1x8x8xf32>
    %30 = vector.shape_cast %29 : vector<1x8x8xf32> to vector<8x8xf32>
    %c0_29 = arith.constant 0 : index
    %c0_30 = arith.constant 0 : index
    %c20 = arith.constant 20 : index
    %31 = vector.load %arg2[%c0_29, %c0_30, %c20] : memref<1x8x512xf32, #tpu.memory_space<vmem>>, vector<1x8x384xf32>
    %32 = vector.shape_cast %31 : vector<1x8x384xf32> to vector<8x384xf32>
    %cst_31 = arith.constant dense<0.000000e+00> : vector<8x384xf32>
    %33 = tpu.matmul %30, %32, %cst_31 {dimension_numbers = #tpu.dot_dimension_numbers<[1], [0], [0], [1], [0, 0, 1, 1], [], []>} : vector<8x8xf32>, vector<8x384xf32>, vector<8x384xf32> -> vector<8x384xf32>
    %34 = arith.addf %28, %33 : vector<8x384xf32>
    %c6 = arith.constant 6 : index
    %c0_32 = arith.constant 0 : index
    %c0_33 = arith.constant 0 : index
    %35 = vector.load %arg1[%c6, %c0_32, %c0_33] : memref<9x8x8xf32, #tpu.memory_space<vmem>>, vector<1x8x8xf32>
    %36 = vector.shape_cast %35 : vector<1x8x8xf32> to vector<8x8xf32>
    %c0_34 = arith.constant 0 : index
    %c0_35 = arith.constant 0 : index
    %c36 = arith.constant 36 : index
    %37 = vector.load %arg2[%c0_34, %c0_35, %c36] : memref<1x8x512xf32, #tpu.memory_space<vmem>>, vector<1x8x384xf32>
    %38 = vector.shape_cast %37 : vector<1x8x384xf32> to vector<8x384xf32>
    %cst_36 = arith.constant dense<0.000000e+00> : vector<8x384xf32>
    %39 = tpu.matmul %36, %38, %cst_36 {dimension_numbers = #tpu.dot_dimension_numbers<[1], [0], [0], [1], [0, 0, 1, 1], [], []>} : vector<8x8xf32>, vector<8x384xf32>, vector<8x384xf32> -> vector<8x384xf32>
    %40 = arith.addf %34, %39 : vector<8x384xf32>
    %c7 = arith.constant 7 : index
    %c0_37 = arith.constant 0 : index
    %c0_38 = arith.constant 0 : index
    %41 = vector.load %arg1[%c7, %c0_37, %c0_38] : memref<9x8x8xf32, #tpu.memory_space<vmem>>, vector<1x8x8xf32>
    %42 = vector.shape_cast %41 : vector<1x8x8xf32> to vector<8x8xf32>
    %c0_39 = arith.constant 0 : index
    %c0_40 = arith.constant 0 : index
    %c37 = arith.constant 37 : index
    %43 = vector.load %arg2[%c0_39, %c0_40, %c37] : memref<1x8x512xf32, #tpu.memory_space<vmem>>, vector<1x8x384xf32>
    %44 = vector.shape_cast %43 : vector<1x8x384xf32> to vector<8x384xf32>
    %cst_41 = arith.constant dense<0.000000e+00> : vector<8x384xf32>
    %45 = tpu.matmul %42, %44, %cst_41 {dimension_numbers = #tpu.dot_dimension_numbers<[1], [0], [0], [1], [0, 0, 1, 1], [], []>} : vector<8x8xf32>, vector<8x384xf32>, vector<8x384xf32> -> vector<8x384xf32>
    %46 = arith.addf %40, %45 : vector<8x384xf32>
    %c8 = arith.constant 8 : index
    %c0_42 = arith.constant 0 : index
    %c0_43 = arith.constant 0 : index
    %47 = vector.load %arg1[%c8, %c0_42, %c0_43] : memref<9x8x8xf32, #tpu.memory_space<vmem>>, vector<1x8x8xf32>
    %48 = vector.shape_cast %47 : vector<1x8x8xf32> to vector<8x8xf32>
    %c0_44 = arith.constant 0 : index
    %c0_45 = arith.constant 0 : index
    %c38 = arith.constant 38 : index
    %49 = vector.load %arg2[%c0_44, %c0_45, %c38] : memref<1x8x512xf32, #tpu.memory_space<vmem>>, vector<1x8x384xf32>
    %50 = vector.shape_cast %49 : vector<1x8x384xf32> to vector<8x384xf32>
    %cst_46 = arith.constant dense<0.000000e+00> : vector<8x384xf32>
    %51 = tpu.matmul %48, %50, %cst_46 {dimension_numbers = #tpu.dot_dimension_numbers<[1], [0], [0], [1], [0, 0, 1, 1], [], []>} : vector<8x8xf32>, vector<8x384xf32>, vector<8x384xf32> -> vector<8x384xf32>
    %52 = arith.addf %46, %51 : vector<8x384xf32>
    %c0_47 = arith.constant 0 : index
    %c0_48 = arith.constant 0 : index
    %c0_49 = arith.constant 0 : index
    %53 = vector.load %arg3[%c0_47, %c0_48, %c0_49] : memref<1x8x384xf32, #tpu.memory_space<vmem>>, vector<1x8x384xf32>
    %54 = vector.shape_cast %53 : vector<1x8x384xf32> to vector<8x384xf32>
    %55 = vector.shape_cast %52 : vector<8x384xf32> to vector<1x8x384xf32>
    tpu.vector_store %arg3[%c0_47, %c0_48, %c0_49], %55 {strides = array<i32>} : memref<1x8x384xf32, #tpu.memory_space<vmem>>, vector<1x8x384xf32>,
    return
  }
  func.func @transform_0(%arg0: i32) -> (i32, i32, i32) {
    %c0_i32 = arith.constant 0 : i32
    %c0_i32_0 = arith.constant 0 : i32
    %c0_i32_1 = arith.constant 0 : i32
    %c0_i32_2 = arith.constant 0 : i32
    return %c0_i32, %c0_i32_0, %c0_i32_1 : i32, i32, i32
  }
  func.func @transform_1(%arg0: i32) -> (i32, i32, i32) {
    %c0_i32 = arith.constant 0 : i32
    %c0_i32_0 = arith.constant 0 : i32
    %c0_i32_1 = arith.constant 0 : i32
    return %arg0, %c0_i32, %c0_i32_0 : i32, i32, i32
  }
  func.func @transform_2(%arg0: i32) -> (i32, i32, i32) {
    %c0_i32 = arith.constant 0 : i32
    %c0_i32_0 = arith.constant 0 : i32
    %c0_i32_1 = arith.constant 0 : i32
    return %arg0, %c0_i32, %c0_i32_0 : i32, i32, i32
  }
}

</mosaic_0001>

<llo_original>
// kernel: tpu_custom_call.1
$region0: #{tpu_custom_call.1}
  #allocation0 [shape = 'u32[]', space=smem, size = 0x4, offset = 0x4, fixed_abs, tag = 'smem constant byte address 0x4 - core index']
  #allocation1 [shape = 'u32[144,128]{1,0:T(1,128)}', space=vmem, size = 0x12000, scoped, tag = 'internal scratch']
  %s0 = inlined_call_operand.vmem [shape: f32[9,8,8], index: 0, kind: input, shape index: {}]
  %s1 = inlined_call_operand.vmem [shape: f32[2,8,512], index: 1, kind: input, shape index: {}]
  %s2 = inlined_call_operand.hbm [shape: f32[2,8,384], index: 2, kind: output, shape index: {}]
  %s3 = sld [smem:[#allocation0]]
  $region41: #{tpu_custom_call.1} parent=0
    _
  %s5 = ssub.s32 1, %s3
  %s6 = scalar_select 0, %s5, %s3
  $region1: #{tpu_custom_call.1} parent=0
    #allocation2 [shape = 'u8[24576]{0}', space=vmem, size = 0x6000, scoped, tag = 'output window, operand 0']
    #allocation3 [shape = 's32[2]{0}', space=sflag, size = 0x8, scoped, tag = 'scoped memory for tpu_custom_call.1']
    %7 = vsyncpa [#allocation3], 0
    %s8 = scalar_lea.sflag [#allocation3], 1
    %9 = vsyncpa %s8, 0
    loop: start=0, step=1, limit=4
    $region2: #{tpu_custom_call.1} parent=1 // loop_pre_header
      _
    $region3: #{tpu_custom_call.1} parent=1 // loop_header
      %s11 = sphi 0, %s15
      %p12 = scmp.ge.s32.totalorder %s11, 4
      %s19 = sphi 0, %s19
      %s21 = sphi 0, %s19
      %s22 = sphi 0, %s21
      %s36 = sphi 0, %s22
      %s42 = sphi 0, %s44
      %s45 = sphi 0, %s42
      %s46 = sphi 0, %s45
      %s62 = sphi 0, %s46
      %s68 = sphi 0, %s70
      %s71 = sphi 0, %s68
      %s72 = sphi 0, %s71
      %s88 = sphi 0, %s72
    $region4: #{tpu_custom_call.1} parent=1 // loop_header_branch
      %14 = sbr.rel (%p12) target = $region8
    $region5: #{tpu_custom_call.1} parent=1 // loop_body
      %s16 = ssub.s32 %s11, 1
      %s17 = ssub.s32 %s11, 2
      %s18 = sadd.s32 %s11, 1
      %s20 = sadd.s32 %s19, 1
      %p23 = scmp.eq.s32.totalorder %s11, 1
      %p24 = scmp.ne.s32.totalorder %s19, %s21
      %p25 = scmp.eq.s32.totalorder %s11, 0
      %p26 = por %p24, %p25
      %p27 = scmp.ne.s32.totalorder %s19, %s21
      %p28 = scmp.eq.s32.totalorder %s16, 1
      %p29 = por %p27, %p28
      %p30 = scmp.ne.s32.totalorder %s21, %s22
      %p31 = scmp.eq.s32.totalorder %s16, 0
      %p32 = por %p30, %p31
      %p33 = scmp.ne.s32.totalorder %s21, %s22
      %p34 = scmp.eq.s32.totalorder %s17, 1
      %p35 = por %p33, %p34
      %p37 = scmp.ne.s32.totalorder %s22, %s36
      %p38 = scmp.eq.s32.totalorder %s17, 0
      %p39 = por %p37, %p38
      %s40 = ssub.s32 %s11, %s18
      %p41 = scmp.eq.s32.totalorder %s40, 0
      %s43 = sadd.s32 %s42, 1
      %s44 = scalar_select %p41, %s42, %s43
      %p47 = pneg %p41
      %p48 = scmp.eq.s32.totalorder %s11, 1
      %p49 = por %p47, %p48
      %p50 = scmp.ne.s32.totalorder %s42, %s45
      %p51 = scmp.eq.s32.totalorder %s11, 0
      %p52 = por %p50, %p51
      %p53 = scmp.ne.s32.totalorder %s42, %s45
      %p54 = scmp.eq.s32.totalorder %s16, 1
      %p55 = por %p53, %p54
      %p56 = scmp.ne.s32.totalorder %s45, %s46
      %p57 = scmp.eq.s32.totalorder %s16, 0
      %p58 = por %p56, %p57
      %p59 = scmp.ne.s32.totalorder %s45, %s46
      %p60 = scmp.eq.s32.totalorder %s17, 1
      %p61 = por %p59, %p60
      %p63 = scmp.ne.s32.totalorder %s46, %s62
      %p64 = scmp.eq.s32.totalorder %s17, 0
      %p65 = por %p63, %p64
      %s66 = ssub.s32 %s11, %s18
      %p67 = scmp.eq.s32.totalorder %s66, 0
      %s69 = sadd.s32 %s68, 1
      %s70 = scalar_select %p67, %s68, %s69
      %p73 = pneg %p67
      %p74 = scmp.eq.s32.totalorder %s11, 1
      %p75 = por %p73, %p74
      %p76 = scmp.ne.s32.totalorder %s68, %s71
      %p77 = scmp.eq.s32.totalorder %s11, 0
      %p78 = por %p76, %p77
      %p79 = scmp.ne.s32.totalorder %s68, %s71
      %p80 = scmp.eq.s32.totalorder %s16, 1
      %p81 = por %p79, %p80
      %p82 = scmp.ne.s32.totalorder %s71, %s72
      %p83 = scmp.eq.s32.totalorder %s16, 0
      %p84 = por %p82, %p83
      %p85 = scmp.ne.s32.totalorder %s71, %s72
      %p86 = scmp.eq.s32.totalorder %s17, 1
      %p87 = por %p85, %p86
      %p89 = scmp.ne.s32.totalorder %s72, %s88
      %p90 = scmp.eq.s32.totalorder %s17, 0
      %p91 = por %p89, %p90
      %p92 = scmp.le.s32.totalorder 1, %s11
      %p93 = scmp.lt.s32.totalorder %s11, 3
      %p94 = pnand %p92, %p93
      %p95 = pneg %p94
      // Predicated region
      $region9: #{tpu_custom_call.1} parent=5 // pred_check
        _
      $region10: #{tpu_custom_call.1} parent=5 // pred_check_branch
        %97 = sbr.rel (%p94) target = $region12
      $region11: #{tpu_custom_call.1} parent=5 // pred_region
        %s98 = ssub.s32 %s11, 1
        // Predicated region
        $region13: #{tpu_custom_call.1} parent=11 // pred_check
          %p99 = pneg %p32
        $region14: #{tpu_custom_call.1} parent=11 // pred_check_branch
          %101 = sbr.rel (%p99) target = $region16
        $region15: #{tpu_custom_call.1} parent=11 // pred_region
          _
        $region16: #{tpu_custom_call.1} parent=11 // pred_fallthru
          _
      $region12: #{tpu_custom_call.1} parent=5 // pred_fallthru
        _
      %p102 = scmp.lt.s32.totalorder %s11, 2
      // Predicated region
      $region17: #{tpu_custom_call.1} parent=5 // pred_check
        %p103 = pneg %p102
      $region18: #{tpu_custom_call.1} parent=5 // pred_check_branch
        %105 = sbr.rel (%p103) target = $region20
      $region19: #{tpu_custom_call.1} parent=5 // pred_region
        // Predicated region
        $region21: #{tpu_custom_call.1} parent=19 // pred_check
          %p106 = pneg %p52
        $region22: #{tpu_custom_call.1} parent=19 // pred_check_branch
          %108 = sbr.rel (%p106) target = $region24
        $region23: #{tpu_custom_call.1} parent=19 // pred_region
          %p109 = scmp.lt.s32.totalorder %s11, 1
          %s110 = scalar_select %p109, %s11, 1
          %s111 = smul.addr %s110, 4
          %s112 = smul.addr %s111, 8
          %s113 = scalar_lea.vmem %s1, %s112
        $region24: #{tpu_custom_call.1} parent=19 // pred_fallthru
          _
      $region20: #{tpu_custom_call.1} parent=5 // pred_fallthru
        _
      %p114 = scmp.le.s32.totalorder 1, %s11
      %p115 = scmp.lt.s32.totalorder %s11, 3
      %p116 = pnand %p114, %p115
      %p117 = pneg %p116
      // Predicated region
      $region25: #{tpu_custom_call.1} parent=5 // pred_check
        _
      $region26: #{tpu_custom_call.1} parent=5 // pred_check_branch
        %119 = sbr.rel (%p116) target = $region28
      $region27: #{tpu_custom_call.1} parent=5 // pred_region
        %s120 = ssub.s32 %s11, 1
        %p121 = pneg %p32
        %p122 = pneg %p29
        %p123 = scmp.lt.s32.totalorder %s16, 1
        %s124 = scalar_select %p123, %s16, 1
        %s125 = smul.addr %s124, 4
        %s126 = smul.addr %s125, 8
        %s127 = scalar_lea.vmem %s1, %s126
        %p128 = pneg %p58
        %p129 = pneg %p55
        %p130 = pneg %p84
        %p131 = pneg %p81
        %s132 = sand.u32 %s71, 1
        %s133 = scalar_lea.sflag [#allocation3], %s132
        %s134 = sand.u32 %s71, 1
        %s135 = smul.addr %s134, 24
        %s136 = scalar_lea.vmem [#allocation2], %s135
        %p137 = scmp.lt.s32.totalorder %s16, 1
        %s138 = scalar_select %p137, %s16, 1
        %s139 = smul.addr %s138, 4
        %s140 = smul.addr %s139, 8
        %s141 = scalar_lea.vmem %s1, %s140
        %v142 = vld [vmem:[%s0] sm:$0xff]
        %v143 = vld [vmem:[%s141] sm:$0xff]
        %v144 = vld [vmem:[%s141 + $0x8] sm:$0xff]
        %v145 = vld [vmem:[%s141 + $0x10] sm:$0xff]
        %s146 = scalar_lea.vmem %s0, 8
        %v147 = vld [vmem:[%s146] sm:$0xff]
        %v148 = vld [vmem:[%s141] sm:$0xff]
        %v149 = vld [vmem:[%s141 + $0x8] sm:$0xff]
        %v150 = vld [vmem:[%s141 + $0x10] sm:$0xff]
        %v151 = vld [vmem:[%s141 + $0x18] sm:$0xff]
        %156 = vrot.lane.b32.xlu0 %v148, 127
        %v157 = vpop.permute.xlu0 %156
        %158 = vrot.lane.b32.xlu0 %v149, 127
        %v159 = vpop.permute.xlu0 %158
        %160 = vrot.lane.b32.xlu0 %v150, 127
        %v161 = vpop.permute.xlu0 %160
        %162 = vrot.lane.b32.xlu0 %v151, 127
        %v163 = vpop.permute.xlu0 %162
        %vm164 = vcmask 1039360
        %v165 = vsel %vm164, %v157, %v159
        %v166 = vsel %vm164, %v159, %v161
        %v167 = vsel %vm164, %v161, %v163
        %vm171 = vcmask 64512
        %v173 = vsel %vm171, %v147, 0
        %175 = vmatprep.subr.mxu0 %v166
        %176 = vmatpush1.msra.mxu0 %v165
        %177 = vmatprep.subr.mxu0 0.0
        %178 = vmatpush1.msra.mxu0 0.0
        %179 = vmatprep.subr.mxu0 0.0
        %180 = vmatpush1.msra.mxu0 0.0
        %181 = vmatprep.subr.mxu0 0.0
        %182 = vmatpush1.msra.mxu0 0.0
        %183 = vmatprep.subr.mxu0 0.0
        %184 = vmatpush1.msra.mxu0 0.0
        %185 = vmatprep.subr.mxu0 0.0
        %186 = vmatpush1.msra.mxu0 0.0
        %187 = vmatprep.subr.mxu0 0.0
        %188 = vmatpush1.msra.mxu0 0.0
        %189 = vmatprep.subr.mxu0 0.0
        %190 = vmatpush1.msra.mxu0 0.0
        %191 = vmatprep.subr.mxu0 0.0
        %192 = vmatpush1.msra.mxu0 0.0
        %193 = vmatprep.subr.mxu0 0.0
        %194 = vmatpush1.msra.mxu0 0.0
        %195 = vmatprep.subr.mxu0 0.0
        %196 = vmatpush1.msra.mxu0 0.0
        %197 = vmatprep.subr.mxu0 0.0
        %198 = vmatpush1.msra.mxu0 0.0
        %199 = vmatprep.subr.mxu0 0.0
        %200 = vmatpush1.msra.mxu0 0.0
        %201 = vmatprep.subr.mxu0 0.0
        %202 = vmatpush1.msra.mxu0 0.0
        %203 = vmatprep.subr.mxu0 0.0
        %204 = vmatpush1.msra.mxu0 0.0
        %205 = vmatprep.subr.mxu0 0.0
        %206 = vmatpush1.msra.mxu0 0.0
        %207 = vmatprep.subr.mxu0 0.0
        %208 = vmatpush1.msra.mxu0 0.0
        %209 = vmatprep.subr.mxu0 0.0
        %210 = vmatpush1.msra.mxu0 0.0
        %211 = vmatprep.subr.mxu0 0.0
        %212 = vmatpush1.msra.mxu0 0.0
        %213 = vmatprep.subr.mxu0 0.0
        %214 = vmatpush1.msra.mxu0 0.0
        %215 = vmatprep.subr.mxu0 0.0
        %216 = vmatpush1.msra.mxu0 0.0
        %217 = vmatprep.subr.mxu0 0.0
        %218 = vmatpush1.msra.mxu0 0.0
        %219 = vmatprep.subr.mxu0 0.0
        %220 = vmatpush1.msra.mxu0 0.0
        %221 = vmatprep.subr.mxu0 0.0
        %222 = vmatpush1.msra.mxu0 0.0
        %223 = vmatprep.subr.mxu0 0.0
        %224 = vmatpush1.msra.mxu0 0.0
        %225 = vmatprep.subr.mxu0 0.0
        %226 = vmatpush1.msra.mxu0 0.0
        %227 = vmatprep.subr.mxu0 0.0
        %228 = vmatpush1.msra.mxu0 0.0
        %229 = vmatprep.subr.mxu0 0.0
        %230 = vmatpush1.msra.mxu0 0.0
        %231 = vmatprep.subr.mxu0 0.0
        %232 = vmatpush1.msra.mxu0 0.0
        %233 = vmatprep.subr.mxu0 0.0
        %234 = vmatpush1.msra.mxu0 0.0
        %235 = vmatprep.subr.mxu0 0.0
        %236 = vmatpush1.msra.mxu0 0.0
        %237 = vmatprep.subr.mxu0 0.0
        %238 = vmatpush1.msra.mxu0 0.0
        %239 = vmatprep.mubr.f32.mxu0 0.0
        %240 = vmatmul.mubr.f32.gmra.mrb[0].mxu0 %v173
        %v241 = vpop.f32.mrb[0].mxu0
        %v242 = vadd.f32 0.0, %v241
        %v243 = vpop.f32.mrb[0].mxu0
        %v244 = vadd.f32 0.0, %v243
        %245 = vdwg.mxu0
        %246 = vmatprep.subr.mxu0 0.0
        %247 = vmatpush1.msra.mxu0 %v167
        %248 = vmatprep.subr.mxu0 0.0
        %249 = vmatpush1.msra.mxu0 0.0
        %250 = vmatprep.subr.mxu0 0.0
        %251 = vmatpush1.msra.mxu0 0.0
        %252 = vmatprep.subr.mxu0 0.0
        %253 = vmatpush1.msra.mxu0 0.0
        %254 = vmatprep.subr.mxu0 0.0
        %255 = vmatpush1.msra.mxu0 0.0
        %256 = vmatprep.subr.mxu0 0.0
        %257 = vmatpush1.msra.mxu0 0.0
        %258 = vmatprep.subr.mxu0 0.0
        %259 = vmatpush1.msra.mxu0 0.0
        %260 = vmatprep.subr.mxu0 0.0
        %261 = vmatpush1.msra.mxu0 0.0
        %262 = vmatprep.subr.mxu0 0.0
        %263 = vmatpush1.msra.mxu0 0.0
        %264 = vmatprep.subr.mxu0 0.0
        %265 = vmatpush1.msra.mxu0 0.0
        %266 = vmatprep.subr.mxu0 0.0
        %267 = vmatpush1.msra.mxu0 0.0
        %268 = vmatprep.subr.mxu0 0.0
        %269 = vmatpush1.msra.mxu0 0.0
        %270 = vmatprep.subr.mxu0 0.0
        %271 = vmatpush1.msra.mxu0 0.0
        %272 = vmatprep.subr.mxu0 0.0
        %273 = vmatpush1.msra.mxu0 0.0
        %274 = vmatprep.subr.mxu0 0.0
        %275 = vmatpush1.msra.mxu0 0.0
        %276 = vmatprep.subr.mxu0 0.0
        %277 = vmatpush1.msra.mxu0 0.0
        %278 = vmatprep.subr.mxu0 0.0
        %279 = vmatpush1.msra.mxu0 0.0
        %280 = vmatprep.subr.mxu0 0.0
        %281 = vmatpush1.msra.mxu0 0.0
        %282 = vmatprep.subr.mxu0 0.0
        %283 = vmatpush1.msra.mxu0 0.0
        %284 = vmatprep.subr.mxu0 0.0
        %285 = vmatpush1.msra.mxu0 0.0
        %286 = vmatprep.subr.mxu0 0.0
        %287 = vmatpush1.msra.mxu0 0.0
        %288 = vmatprep.subr.mxu0 0.0
        %289 = vmatpush1.msra.mxu0 0.0
        %290 = vmatprep.subr.mxu0 0.0
        %291 = vmatpush1.msra.mxu0 0.0
        %292 = vmatprep.subr.mxu0 0.0
        %293 = vmatpush1.msra.mxu0 0.0
        %294 = vmatprep.subr.mxu0 0.0
        %295 = vmatpush1.msra.mxu0 0.0
        %296 = vmatprep.subr.mxu0 0.0
        %297 = vmatpush1.msra.mxu0 0.0
        %298 = vmatprep.subr.mxu0 0.0
        %299 = vmatpush1.msra.mxu0 0.0
        %300 = vmatprep.subr.mxu0 0.0
        %301 = vmatpush1.msra.mxu0 0.0
        %302 = vmatprep.subr.mxu0 0.0
        %303 = vmatpush1.msra.mxu0 0.0
        %304 = vmatprep.subr.mxu0 0.0
        %305 = vmatpush1.msra.mxu0 0.0
        %306 = vmatprep.subr.mxu0 0.0
        %307 = vmatpush1.msra.mxu0 0.0
        %308 = vmatprep.subr.mxu0 0.0
        %309 = vmatpush1.msra.mxu0 0.0
        %310 = vmatprep.mubr.f32.mxu0 0.0
        %311 = vmatmul.mubr.f32.gmra.mrb[0].mxu0 %v173
        %v312 = vpop.f32.mrb[0].mxu0
        %v313 = vadd.f32 0.0, %v312
        %v314 = vpop.f32.mrb[0].mxu0
        %315 = vdwg.mxu0
        %v317 = vsel %vm171, %v142, 0
        %319 = vmatprep.subr.mxu0 %v144
        %320 = vmatpush1.msra.mxu0 %v143
        %321 = vmatprep.subr.mxu0 0.0
        %322 = vmatpush1.msra.mxu0 0.0
        %323 = vmatprep.subr.mxu0 0.0
        %324 = vmatpush1.msra.mxu0 0.0
        %325 = vmatprep.subr.mxu0 0.0
        %326 = vmatpush1.msra.mxu0 0.0
        %327 = vmatprep.subr.mxu0 0.0
        %328 = vmatpush1.msra.mxu0 0.0
        %329 = vmatprep.subr.mxu0 0.0
        %330 = vmatpush1.msra.mxu0 0.0
        %331 = vmatprep.subr.mxu0 0.0
        %332 = vmatpush1.msra.mxu0 0.0
        %333 = vmatprep.subr.mxu0 0.0
        %334 = vmatpush1.msra.mxu0 0.0
        %335 = vmatprep.subr.mxu0 0.0
        %336 = vmatpush1.msra.mxu0 0.0
        %337 = vmatprep.subr.mxu0 0.0
        %338 = vmatpush1.msra.mxu0 0.0
        %339 = vmatprep.subr.mxu0 0.0
        %340 = vmatpush1.msra.mxu0 0.0
        %341 = vmatprep.subr.mxu0 0.0
        %342 = vmatpush1.msra.mxu0 0.0
        %343 = vmatprep.subr.mxu0 0.0
        %344 = vmatpush1.msra.mxu0 0.0
        %345 = vmatprep.subr.mxu0 0.0
        %346 = vmatpush1.msra.mxu0 0.0
        %347 = vmatprep.subr.mxu0 0.0
        %348 = vmatpush1.msra.mxu0 0.0
        %349 = vmatprep.subr.mxu0 0.0
        %350 = vmatpush1.msra.mxu0 0.0
        %351 = vmatprep.subr.mxu0 0.0
        %352 = vmatpush1.msra.mxu0 0.0
        %353 = vmatprep.subr.mxu0 0.0
        %354 = vmatpush1.msra.mxu0 0.0
        %355 = vmatprep.subr.mxu0 0.0
        %356 = vmatpush1.msra.mxu0 0.0
        %357 = vmatprep.subr.mxu0 0.0
        %358 = vmatpush1.msra.mxu0 0.0
        %359 = vmatprep.subr.mxu0 0.0
        %360 = vmatpush1.msra.mxu0 0.0
        %361 = vmatprep.subr.mxu0 0.0
        %362 = vmatpush1.msra.mxu0 0.0
        %363 = vmatprep.subr.mxu0 0.0
        %364 = vmatpush1.msra.mxu0 0.0
        %365 = vmatprep.subr.mxu0 0.0
        %366 = vmatpush1.msra.mxu0 0.0
        %367 = vmatprep.subr.mxu0 0.0
        %368 = vmatpush1.msra.mxu0 0.0
        %369 = vmatprep.subr.mxu0 0.0
        %370 = vmatpush1.msra.mxu0 0.0
        %371 = vmatprep.subr.mxu0 0.0
        %372 = vmatpush1.msra.mxu0 0.0
        %373 = vmatprep.subr.mxu0 0.0
        %374 = vmatpush1.msra.mxu0 0.0
        %375 = vmatprep.subr.mxu0 0.0
        %376 = vmatpush1.msra.mxu0 0.0
        %377 = vmatprep.subr.mxu0 0.0
        %378 = vmatpush1.msra.mxu0 0.0
        %379 = vmatprep.subr.mxu0 0.0
        %380 = vmatpush1.msra.mxu0 0.0
        %381 = vmatprep.subr.mxu0 0.0
        %382 = vmatpush1.msra.mxu0 0.0
        %383 = vmatprep.mubr.f32.mxu0 0.0
        %384 = vmatmul.mubr.f32.gmra.mrb[0].mxu0 %v317
        %v385 = vpop.f32.mrb[0].mxu0
        %v386 = vadd.f32 %v242, %v385
        %v387 = vpop.f32.mrb[0].mxu0
        %v388 = vadd.f32 %v244, %v387
        %389 = vdwg.mxu0
        %390 = vmatprep.subr.mxu0 0.0
        %391 = vmatpush1.msra.mxu0 %v145
        %392 = vmatprep.subr.mxu0 0.0
        %393 = vmatpush1.msra.mxu0 0.0
        %394 = vmatprep.subr.mxu0 0.0
        %395 = vmatpush1.msra.mxu0 0.0
        %396 = vmatprep.subr.mxu0 0.0
        %397 = vmatpush1.msra.mxu0 0.0
        %398 = vmatprep.subr.mxu0 0.0
        %399 = vmatpush1.msra.mxu0 0.0
        %400 = vmatprep.subr.mxu0 0.0
        %401 = vmatpush1.msra.mxu0 0.0
        %402 = vmatprep.subr.mxu0 0.0
        %403 = vmatpush1.msra.mxu0 0.0
        %404 = vmatprep.subr.mxu0 0.0
        %405 = vmatpush1.msra.mxu0 0.0
        %406 = vmatprep.subr.mxu0 0.0
        %407 = vmatpush1.msra.mxu0 0.0
        %408 = vmatprep.subr.mxu0 0.0
        %409 = vmatpush1.msra.mxu0 0.0
        %410 = vmatprep.subr.mxu0 0.0
        %411 = vmatpush1.msra.mxu0 0.0
        %412 = vmatprep.subr.mxu0 0.0
        %413 = vmatpush1.msra.mxu0 0.0
        %414 = vmatprep.subr.mxu0 0.0
        %415 = vmatpush1.msra.mxu0 0.0
        %416 = vmatprep.subr.mxu0 0.0
        %417 = vmatpush1.msra.mxu0 0.0
        %418 = vmatprep.subr.mxu0 0.0
        %419 = vmatpush1.msra.mxu0 0.0
        %420 = vmatprep.subr.mxu0 0.0
        %421 = vmatpush1.msra.mxu0 0.0
        %422 = vmatprep.subr.mxu0 0.0
        %423 = vmatpush1.msra.mxu0 0.0
        %424 = vmatprep.subr.mxu0 0.0
        %425 = vmatpush1.msra.mxu0 0.0
        %426 = vmatprep.subr.mxu0 0.0
        %427 = vmatpush1.msra.mxu0 0.0
        %428 = vmatprep.subr.mxu0 0.0
        %429 = vmatpush1.msra.mxu0 0.0
        %430 = vmatprep.subr.mxu0 0.0
        %431 = vmatpush1.msra.mxu0 0.0
        %432 = vmatprep.subr.mxu0 0.0
        %433 = vmatpush1.msra.mxu0 0.0
        %434 = vmatprep.subr.mxu0 0.0
        %435 = vmatpush1.msra.mxu0 0.0
        %436 = vmatprep.subr.mxu0 0.0
        %437 = vmatpush1.msra.mxu0 0.0
        %438 = vmatprep.subr.mxu0 0.0
        %439 = vmatpush1.msra.mxu0 0.0
        %440 = vmatprep.subr.mxu0 0.0
        %441 = vmatpush1.msra.mxu0 0.0
        %442 = vmatprep.subr.mxu0 0.0
        %443 = vmatpush1.msra.mxu0 0.0
        %444 = vmatprep.subr.mxu0 0.0
        %445 = vmatpush1.msra.mxu0 0.0
        %446 = vmatprep.subr.mxu0 0.0
        %447 = vmatpush1.msra.mxu0 0.0
        %448 = vmatprep.subr.mxu0 0.0
        %449 = vmatpush1.msra.mxu0 0.0
        %450 = vmatprep.subr.mxu0 0.0
        %451 = vmatpush1.msra.mxu0 0.0
        %452 = vmatprep.subr.mxu0 0.0
        %453 = vmatpush1.msra.mxu0 0.0
        %454 = vmatprep.mubr.f32.mxu0 0.0
        %455 = vmatmul.mubr.f32.gmra.mrb[0].mxu0 %v317
        %v456 = vpop.f32.mrb[0].mxu0
        %v457 = vadd.f32 %v313, %v456
        %v458 = vpop.f32.mrb[0].mxu0
        %459 = vdwg.mxu0
        %s460 = scalar_lea.vmem %s0, 16
        %v461 = vld [vmem:[%s460] sm:$0xff]
        %462 = vrot.lane.b32.xlu0 %v148, 126
        %v463 = vpop.permute.xlu0 %462
        %464 = vrot.lane.b32.xlu0 %v149, 126
        %v465 = vpop.permute.xlu0 %464
        %466 = vrot.lane.b32.xlu0 %v150, 126
        %v467 = vpop.permute.xlu0 %466
        %468 = vrot.lane.b32.xlu0 %v151, 126
        %v469 = vpop.permute.xlu0 %468
        %vm470 = vcmask 1031168
        %v471 = vsel %vm470, %v463, %v465
        %v472 = vsel %vm470, %v465, %v467
        %v473 = vsel %vm470, %v467, %v469
        %v478 = vsel %vm171, %v461, 0
        %480 = vmatprep.subr.mxu0 %v472
        %481 = vmatpush1.msra.mxu0 %v471
        %482 = vmatprep.subr.mxu0 0.0
        %483 = vmatpush1.msra.mxu0 0.0
        %484 = vmatprep.subr.mxu0 0.0
        %485 = vmatpush1.msra.mxu0 0.0
        %486 = vmatprep.subr.mxu0 0.0
        %487 = vmatpush1.msra.mxu0 0.0
        %488 = vmatprep.subr.mxu0 0.0
        %489 = vmatpush1.msra.mxu0 0.0
        %490 = vmatprep.subr.mxu0 0.0
        %491 = vmatpush1.msra.mxu0 0.0
        %492 = vmatprep.subr.mxu0 0.0
        %493 = vmatpush1.msra.mxu0 0.0
        %494 = vmatprep.subr.mxu0 0.0
        %495 = vmatpush1.msra.mxu0 0.0
        %496 = vmatprep.subr.mxu0 0.0
        %497 = vmatpush1.msra.mxu0 0.0
        %498 = vmatprep.subr.mxu0 0.0
        %499 = vmatpush1.msra.mxu0 0.0
        %500 = vmatprep.subr.mxu0 0.0
        %501 = vmatpush1.msra.mxu0 0.0
        %502 = vmatprep.subr.mxu0 0.0
        %503 = vmatpush1.msra.mxu0 0.0
        %504 = vmatprep.subr.mxu0 0.0
        %505 = vmatpush1.msra.mxu0 0.0
        %506 = vmatprep.subr.mxu0 0.0
        %507 = vmatpush1.msra.mxu0 0.0
        %508 = vmatprep.subr.mxu0 0.0
        %509 = vmatpush1.msra.mxu0 0.0
        %510 = vmatprep.subr.mxu0 0.0
        %511 = vmatpush1.msra.mxu0 0.0
        %512 = vmatprep.subr.mxu0 0.0
        %513 = vmatpush1.msra.mxu0 0.0
        %514 = vmatprep.subr.mxu0 0.0
        %515 = vmatpush1.msra.mxu0 0.0
        %516 = vmatprep.subr.mxu0 0.0
        %517 = vmatpush1.msra.mxu0 0.0
        %518 = vmatprep.subr.mxu0 0.0
        %519 = vmatpush1.msra.mxu0 0.0
        %520 = vmatprep.subr.mxu0 0.0
        %521 = vmatpush1.msra.mxu0 0.0
        %522 = vmatprep.subr.mxu0 0.0
        %523 = vmatpush1.msra.mxu0 0.0
        %524 = vmatprep.subr.mxu0 0.0
        %525 = vmatpush1.msra.mxu0 0.0
        %526 = vmatprep.subr.mxu0 0.0
        %527 = vmatpush1.msra.mxu0 0.0
        %528 = vmatprep.subr.mxu0 0.0
        %529 = vmatpush1.msra.mxu0 0.0
        %530 = vmatprep.subr.mxu0 0.0
        %531 = vmatpush1.msra.mxu0 0.0
        %532 = vmatprep.subr.mxu0 0.0
        %533 = vmatpush1.msra.mxu0 0.0
        %534 = vmatprep.subr.mxu0 0.0
        %535 = vmatpush1.msra.mxu0 0.0
        %536 = vmatprep.subr.mxu0 0.0
        %537 = vmatpush1.msra.mxu0 0.0
        %538 = vmatprep.subr.mxu0 0.0
        %539 = vmatpush1.msra.mxu0 0.0
        %540 = vmatprep.subr.mxu0 0.0
        %541 = vmatpush1.msra.mxu0 0.0
        %542 = vmatprep.subr.mxu0 0.0
        %543 = vmatpush1.msra.mxu0 0.0
        %544 = vmatprep.mubr.f32.mxu0 0.0
        %545 = vmatmul.mubr.f32.gmra.mrb[0].mxu0 %v478
        %v546 = vpop.f32.mrb[0].mxu0
        %v547 = vadd.f32 0.0, %v546
        %v548 = vpop.f32.mrb[0].mxu0
        %v549 = vadd.f32 0.0, %v548
        %550 = vdwg.mxu0
        %551 = vmatprep.subr.mxu0 0.0
        %552 = vmatpush1.msra.mxu0 %v473
        %553 = vmatprep.subr.mxu0 0.0
        %554 = vmatpush1.msra.mxu0 0.0
        %555 = vmatprep.subr.mxu0 0.0
        %556 = vmatpush1.msra.mxu0 0.0
        %557 = vmatprep.subr.mxu0 0.0
        %558 = vmatpush1.msra.mxu0 0.0
        %559 = vmatprep.subr.mxu0 0.0
        %560 = vmatpush1.msra.mxu0 0.0
        %561 = vmatprep.subr.mxu0 0.0
        %562 = vmatpush1.msra.mxu0 0.0
        %563 = vmatprep.subr.mxu0 0.0
        %564 = vmatpush1.msra.mxu0 0.0
        %565 = vmatprep.subr.mxu0 0.0
        %566 = vmatpush1.msra.mxu0 0.0
        %567 = vmatprep.subr.mxu0 0.0
        %568 = vmatpush1.msra.mxu0 0.0
        %569 = vmatprep.subr.mxu0 0.0
        %570 = vmatpush1.msra.mxu0 0.0
        %571 = vmatprep.subr.mxu0 0.0
        %572 = vmatpush1.msra.mxu0 0.0
        %573 = vmatprep.subr.mxu0 0.0
        %574 = vmatpush1.msra.mxu0 0.0
        %575 = vmatprep.subr.mxu0 0.0
        %576 = vmatpush1.msra.mxu0 0.0
        %577 = vmatprep.subr.mxu0 0.0
        %578 = vmatpush1.msra.mxu0 0.0
        %579 = vmatprep.subr.mxu0 0.0
        %580 = vmatpush1.msra.mxu0 0.0
        %581 = vmatprep.subr.mxu0 0.0
        %582 = vmatpush1.msra.mxu0 0.0
        %583 = vmatprep.subr.mxu0 0.0
        %584 = vmatpush1.msra.mxu0 0.0
        %585 = vmatprep.subr.mxu0 0.0
        %586 = vmatpush1.msra.mxu0 0.0
        %587 = vmatprep.subr.mxu0 0.0
        %588 = vmatpush1.msra.mxu0 0.0
        %589 = vmatprep.subr.mxu0 0.0
        %590 = vmatpush1.msra.mxu0 0.0
        %591 = vmatprep.subr.mxu0 0.0
        %592 = vmatpush1.msra.mxu0 0.0
        %593 = vmatprep.subr.mxu0 0.0
        %594 = vmatpush1.msra.mxu0 0.0
        %595 = vmatprep.subr.mxu0 0.0
        %596 = vmatpush1.msra.mxu0 0.0
        %597 = vmatprep.subr.mxu0 0.0
        %598 = vmatpush1.msra.mxu0 0.0
        %599 = vmatprep.subr.mxu0 0.0
        %600 = vmatpush1.msra.mxu0 0.0
        %601 = vmatprep.subr.mxu0 0.0
        %602 = vmatpush1.msra.mxu0 0.0
        %603 = vmatprep.subr.mxu0 0.0
        %604 = vmatpush1.msra.mxu0 0.0
        %605 = vmatprep.subr.mxu0 0.0
        %606 = vmatpush1.msra.mxu0 0.0
        %607 = vmatprep.subr.mxu0 0.0
        %608 = vmatpush1.msra.mxu0 0.0
        %609 = vmatprep.subr.mxu0 0.0
        %610 = vmatpush1.msra.mxu0 0.0
        %611 = vmatprep.subr.mxu0 0.0
        %612 = vmatpush1.msra.mxu0 0.0
        %613 = vmatprep.subr.mxu0 0.0
        %614 = vmatpush1.msra.mxu0 0.0
        %615 = vmatprep.mubr.f32.mxu0 0.0
        %616 = vmatmul.mubr.f32.gmra.mrb[0].mxu0 %v478
        %v617 = vpop.f32.mrb[0].mxu0
        %v618 = vadd.f32 0.0, %v617
        %v619 = vpop.f32.mrb[0].mxu0
        %620 = vdwg.mxu0
        %v621 = vadd.f32 %v386, %v547
        %v622 = vadd.f32 %v388, %v549
        %v623 = vadd.f32 %v457, %v618
        %s624 = scalar_lea.vmem %s0, 24
        %v625 = vld [vmem:[%s624] sm:$0xff]
        %626 = vrot.lane.b32.xlu0 %v148, 110
        %v627 = vpop.permute.xlu0 %626
        %628 = vrot.lane.b32.xlu0 %v149, 110
        %v629 = vpop.permute.xlu0 %628
        %630 = vrot.lane.b32.xlu0 %v150, 110
        %v631 = vpop.permute.xlu0 %630
        %632 = vrot.lane.b32.xlu0 %v151, 110
        %v633 = vpop.permute.xlu0 %632
        %vm634 = vcmask 900096
        %v635 = vsel %vm634, %v627, %v629
        %v636 = vsel %vm634, %v629, %v631
        %v637 = vsel %vm634, %v631, %v633
        %v642 = vsel %vm171, %v625, 0
        %644 = vmatprep.subr.mxu0 %v636
        %645 = vmatpush1.msra.mxu0 %v635
        %646 = vmatprep.subr.mxu0 0.0
        %647 = vmatpush1.msra.mxu0 0.0
        %648 = vmatprep.subr.mxu0 0.0
        %649 = vmatpush1.msra.mxu0 0.0
        %650 = vmatprep.subr.mxu0 0.0
        %651 = vmatpush1.msra.mxu0 0.0
        %652 = vmatprep.subr.mxu0 0.0
        %653 = vmatpush1.msra.mxu0 0.0
        %654 = vmatprep.subr.mxu0 0.0
        %655 = vmatpush1.msra.mxu0 0.0
        %656 = vmatprep.subr.mxu0 0.0
        %657 = vmatpush1.msra.mxu0 0.0
        %658 = vmatprep.subr.mxu0 0.0
        %659 = vmatpush1.msra.mxu0 0.0
        %660 = vmatprep.subr.mxu0 0.0
        %661 = vmatpush1.msra.mxu0 0.0
        %662 = vmatprep.subr.mxu0 0.0
        %663 = vmatpush1.msra.mxu0 0.0
        %664 = vmatprep.subr.mxu0 0.0
        %665 = vmatpush1.msra.mxu0 0.0
        %666 = vmatprep.subr.mxu0 0.0
        %667 = vmatpush1.msra.mxu0 0.0
        %668 = vmatprep.subr.mxu0 0.0
        %669 = vmatpush1.msra.mxu0 0.0
        %670 = vmatprep.subr.mxu0 0.0
        %671 = vmatpush1.msra.mxu0 0.0
        %672 = vmatprep.subr.mxu0 0.0
        %673 = vmatpush1.msra.mxu0 0.0
        %674 = vmatprep.subr.mxu0 0.0
        %675 = vmatpush1.msra.mxu0 0.0
        %676 = vmatprep.subr.mxu0 0.0
        %677 = vmatpush1.msra.mxu0 0.0
        %678 = vmatprep.subr.mxu0 0.0
        %679 = vmatpush1.msra.mxu0 0.0
        %680 = vmatprep.subr.mxu0 0.0
        %681 = vmatpush1.msra.mxu0 0.0
        %682 = vmatprep.subr.mxu0 0.0
        %683 = vmatpush1.msra.mxu0 0.0
        %684 = vmatprep.subr.mxu0 0.0
        %685 = vmatpush1.msra.mxu0 0.0
        %686 = vmatprep.subr.mxu0 0.0
        %687 = vmatpush1.msra.mxu0 0.0
        %688 = vmatprep.subr.mxu0 0.0
        %689 = vmatpush1.msra.mxu0 0.0
        %690 = vmatprep.subr.mxu0 0.0
        %691 = vmatpush1.msra.mxu0 0.0
        %692 = vmatprep.subr.mxu0 0.0
        %693 = vmatpush1.msra.mxu0 0.0
        %694 = vmatprep.subr.mxu0 0.0
        %695 = vmatpush1.msra.mxu0 0.0
        %696 = vmatprep.subr.mxu0 0.0
        %697 = vmatpush1.msra.mxu0 0.0
        %698 = vmatprep.subr.mxu0 0.0
        %699 = vmatpush1.msra.mxu0 0.0
        %700 = vmatprep.subr.mxu0 0.0
        %701 = vmatpush1.msra.mxu0 0.0
        %702 = vmatprep.subr.mxu0 0.0
        %703 = vmatpush1.msra.mxu0 0.0
        %704 = vmatprep.subr.mxu0 0.0
        %705 = vmatpush1.msra.mxu0 0.0
        %706 = vmatprep.subr.mxu0 0.0
        %707 = vmatpush1.msra.mxu0 0.0
        %708 = vmatprep.mubr.f32.mxu0 0.0
        %709 = vmatmul.mubr.f32.gmra.mrb[0].mxu0 %v642
        %v710 = vpop.f32.mrb[0].mxu0
        %v711 = vadd.f32 0.0, %v710
        %v712 = vpop.f32.mrb[0].mxu0
        %v713 = vadd.f32 0.0, %v712
        %714 = vdwg.mxu0
        %715 = vmatprep.subr.mxu0 0.0
        %716 = vmatpush1.msra.mxu0 %v637
        %717 = vmatprep.subr.mxu0 0.0
        %718 = vmatpush1.msra.mxu0 0.0
        %719 = vmatprep.subr.mxu0 0.0
        %720 = vmatpush1.msra.mxu0 0.0
        %721 = vmatprep.subr.mxu0 0.0
        %722 = vmatpush1.msra.mxu0 0.0
        %723 = vmatprep.subr.mxu0 0.0
        %724 = vmatpush1.msra.mxu0 0.0
        %725 = vmatprep.subr.mxu0 0.0
        %726 = vmatpush1.msra.mxu0 0.0
        %727 = vmatprep.subr.mxu0 0.0
        %728 = vmatpush1.msra.mxu0 0.0
        %729 = vmatprep.subr.mxu0 0.0
        %730 = vmatpush1.msra.mxu0 0.0
        %731 = vmatprep.subr.mxu0 0.0
        %732 = vmatpush1.msra.mxu0 0.0
        %733 = vmatprep.subr.mxu0 0.0
        %734 = vmatpush1.msra.mxu0 0.0
        %735 = vmatprep.subr.mxu0 0.0
        %736 = vmatpush1.msra.mxu0 0.0
        %737 = vmatprep.subr.mxu0 0.0
        %738 = vmatpush1.msra.mxu0 0.0
        %739 = vmatprep.subr.mxu0 0.0
        %740 = vmatpush1.msra.mxu0 0.0
        %741 = vmatprep.subr.mxu0 0.0
        %742 = vmatpush1.msra.mxu0 0.0
        %743 = vmatprep.subr.mxu0 0.0
        %744 = vmatpush1.msra.mxu0 0.0
        %745 = vmatprep.subr.mxu0 0.0
        %746 = vmatpush1.msra.mxu0 0.0
        %747 = vmatprep.subr.mxu0 0.0
        %748 = vmatpush1.msra.mxu0 0.0
        %749 = vmatprep.subr.mxu0 0.0
        %750 = vmatpush1.msra.mxu0 0.0
        %751 = vmatprep.subr.mxu0 0.0
        %752 = vmatpush1.msra.mxu0 0.0
        %753 = vmatprep.subr.mxu0 0.0
        %754 = vmatpush1.msra.mxu0 0.0
        %755 = vmatprep.subr.mxu0 0.0
        %756 = vmatpush1.msra.mxu0 0.0
        %757 = vmatprep.subr.mxu0 0.0
        %758 = vmatpush1.msra.mxu0 0.0
        %759 = vmatprep.subr.mxu0 0.0
        %760 = vmatpush1.msra.mxu0 0.0
        %761 = vmatprep.subr.mxu0 0.0
        %762 = vmatpush1.msra.mxu0 0.0
        %763 = vmatprep.subr.mxu0 0.0
        %764 = vmatpush1.msra.mxu0 0.0
        %765 = vmatprep.subr.mxu0 0.0
        %766 = vmatpush1.msra.mxu0 0.0
        %767 = vmatprep.subr.mxu0 0.0
        %768 = vmatpush1.msra.mxu0 0.0
        %769 = vmatprep.subr.mxu0 0.0
        %770 = vmatpush1.msra.mxu0 0.0
        %771 = vmatprep.subr.mxu0 0.0
        %772 = vmatpush1.msra.mxu0 0.0
        %773 = vmatprep.subr.mxu0 0.0
        %774 = vmatpush1.msra.mxu0 0.0
        %775 = vmatprep.subr.mxu0 0.0
        %776 = vmatpush1.msra.mxu0 0.0
        %777 = vmatprep.subr.mxu0 0.0
        %778 = vmatpush1.msra.mxu0 0.0
        %779 = vmatprep.mubr.f32.mxu0 0.0
        %780 = vmatmul.mubr.f32.gmra.mrb[0].mxu0 %v642
        %v781 = vpop.f32.mrb[0].mxu0
        %v782 = vadd.f32 0.0, %v781
        %v783 = vpop.f32.mrb[0].mxu0
        %784 = vdwg.mxu0
        %v785 = vadd.f32 %v621, %v711
        %v786 = vadd.f32 %v622, %v713
        %v787 = vadd.f32 %v623, %v782
        %s788 = scalar_lea.vmem %s0, 32
        %v789 = vld [vmem:[%s788] sm:$0xff]
        %790 = vrot.lane.b32.xlu0 %v148, 109
        %v791 = vpop.permute.xlu0 %790
        %792 = vrot.lane.b32.xlu0 %v149, 109
        %v793 = vpop.permute.xlu0 %792
        %794 = vrot.lane.b32.xlu0 %v150, 109
        %v795 = vpop.permute.xlu0 %794
        %796 = vrot.lane.b32.xlu0 %v151, 109
        %v797 = vpop.permute.xlu0 %796
        %vm798 = vcmask 891904
        %v799 = vsel %vm798, %v791, %v793
        %v800 = vsel %vm798, %v793, %v795
        %v801 = vsel %vm798, %v795, %v797
        %v806 = vsel %vm171, %v789, 0
        %808 = vmatprep.subr.mxu0 %v800
        %809 = vmatpush1.msra.mxu0 %v799
        %810 = vmatprep.subr.mxu0 0.0
        %811 = vmatpush1.msra.mxu0 0.0
        %812 = vmatprep.subr.mxu0 0.0
        %813 = vmatpush1.msra.mxu0 0.0
        %814 = vmatprep.subr.mxu0 0.0
        %815 = vmatpush1.msra.mxu0 0.0
        %816 = vmatprep.subr.mxu0 0.0
        %817 = vmatpush1.msra.mxu0 0.0
        %818 = vmatprep.subr.mxu0 0.0
        %819 = vmatpush1.msra.mxu0 0.0
        %820 = vmatprep.subr.mxu0 0.0
        %821 = vmatpush1.msra.mxu0 0.0
        %822 = vmatprep.subr.mxu0 0.0
        %823 = vmatpush1.msra.mxu0 0.0
        %824 = vmatprep.subr.mxu0 0.0
        %825 = vmatpush1.msra.mxu0 0.0
        %826 = vmatprep.subr.mxu0 0.0
        %827 = vmatpush1.msra.mxu0 0.0
        %828 = vmatprep.subr.mxu0 0.0
        %829 = vmatpush1.msra.mxu0 0.0
        %830 = vmatprep.subr.mxu0 0.0
        %831 = vmatpush1.msra.mxu0 0.0
        %832 = vmatprep.subr.mxu0 0.0
        %833 = vmatpush1.msra.mxu0 0.0
        %834 = vmatprep.subr.mxu0 0.0
        %835 = vmatpush1.msra.mxu0 0.0
        %836 = vmatprep.subr.mxu0 0.0
        %837 = vmatpush1.msra.mxu0 0.0
        %838 = vmatprep.subr.mxu0 0.0
        %839 = vmatpush1.msra.mxu0 0.0
        %840 = vmatprep.subr.mxu0 0.0
        %841 = vmatpush1.msra.mxu0 0.0
        %842 = vmatprep.subr.mxu0 0.0
        %843 = vmatpush1.msra.mxu0 0.0
        %844 = vmatprep.subr.mxu0 0.0
        %845 = vmatpush1.msra.mxu0 0.0
        %846 = vmatprep.subr.mxu0 0.0
        %847 = vmatpush1.msra.mxu0 0.0
        %848 = vmatprep.subr.mxu0 0.0
        %849 = vmatpush1.msra.mxu0 0.0
        %850 = vmatprep.subr.mxu0 0.0
        %851 = vmatpush1.msra.mxu0 0.0
        %852 = vmatprep.subr.mxu0 0.0
        %853 = vmatpush1.msra.mxu0 0.0
        %854 = vmatprep.subr.mxu0 0.0
        %855 = vmatpush1.msra.mxu0 0.0
        %856 = vmatprep.subr.mxu0 0.0
        %857 = vmatpush1.msra.mxu0 0.0
        %858 = vmatprep.subr.mxu0 0.0
        %859 = vmatpush1.msra.mxu0 0.0
        %860 = vmatprep.subr.mxu0 0.0
        %861 = vmatpush1.msra.mxu0 0.0
        %862 = vmatprep.subr.mxu0 0.0
        %863 = vmatpush1.msra.mxu0 0.0
        %864 = vmatprep.subr.mxu0 0.0
        %865 = vmatpush1.msra.mxu0 0.0
        %866 = vmatprep.subr.mxu0 0.0
        %867 = vmatpush1.msra.mxu0 0.0
        %868 = vmatprep.subr.mxu0 0.0
        %869 = vmatpush1.msra.mxu0 0.0
        %870 = vmatprep.subr.mxu0 0.0
        %871 = vmatpush1.msra.mxu0 0.0
        %872 = vmatprep.mubr.f32.mxu0 0.0
        %873 = vmatmul.mubr.f32.gmra.mrb[0].mxu0 %v806
        %v874 = vpop.f32.mrb[0].mxu0
        %v875 = vadd.f32 0.0, %v874
        %v876 = vpop.f32.mrb[0].mxu0
        %v877 = vadd.f32 0.0, %v876
        %878 = vdwg.mxu0
        %879 = vmatprep.subr.mxu0 0.0
        %880 = vmatpush1.msra.mxu0 %v801
        %881 = vmatprep.subr.mxu0 0.0
        %882 = vmatpush1.msra.mxu0 0.0
        %883 = vmatprep.subr.mxu0 0.0
        %884 = vmatpush1.msra.mxu0 0.0
        %885 = vmatprep.subr.mxu0 0.0
        %886 = vmatpush1.msra.mxu0 0.0
        %887 = vmatprep.subr.mxu0 0.0
        %888 = vmatpush1.msra.mxu0 0.0
        %889 = vmatprep.subr.mxu0 0.0
        %890 = vmatpush1.msra.mxu0 0.0
        %891 = vmatprep.subr.mxu0 0.0
        %892 = vmatpush1.msra.mxu0 0.0
        %893 = vmatprep.subr.mxu0 0.0
        %894 = vmatpush1.msra.mxu0 0.0
        %895 = vmatprep.subr.mxu0 0.0
        %896 = vmatpush1.msra.mxu0 0.0
        %897 = vmatprep.subr.mxu0 0.0
        %898 = vmatpush1.msra.mxu0 0.0
        %899 = vmatprep.subr.mxu0 0.0
        %900 = vmatpush1.msra.mxu0 0.0
        %901 = vmatprep.subr.mxu0 0.0
        %902 = vmatpush1.msra.mxu0 0.0
        %903 = vmatprep.subr.mxu0 0.0
        %904 = vmatpush1.msra.mxu0 0.0
        %905 = vmatprep.subr.mxu0 0.0
        %906 = vmatpush1.msra.mxu0 0.0
        %907 = vmatprep.subr.mxu0 0.0
        %908 = vmatpush1.msra.mxu0 0.0
        %909 = vmatprep.subr.mxu0 0.0
        %910 = vmatpush1.msra.mxu0 0.0
        %911 = vmatprep.subr.mxu0 0.0
        %912 = vmatpush1.msra.mxu0 0.0
        %913 = vmatprep.subr.mxu0 0.0
        %914 = vmatpush1.msra.mxu0 0.0
        %915 = vmatprep.subr.mxu0 0.0
        %916 = vmatpush1.msra.mxu0 0.0
        %917 = vmatprep.subr.mxu0 0.0
        %918 = vmatpush1.msra.mxu0 0.0
        %919 = vmatprep.subr.mxu0 0.0
        %920 = vmatpush1.msra.mxu0 0.0
        %921 = vmatprep.subr.mxu0 0.0
        %922 = vmatpush1.msra.mxu0 0.0
        %923 = vmatprep.subr.mxu0 0.0
        %924 = vmatpush1.msra.mxu0 0.0
        %925 = vmatprep.subr.mxu0 0.0
        %926 = vmatpush1.msra.mxu0 0.0
        %927 = vmatprep.subr.mxu0 0.0
        %928 = vmatpush1.msra.mxu0 0.0
        %929 = vmatprep.subr.mxu0 0.0
        %930 = vmatpush1.msra.mxu0 0.0
        %931 = vmatprep.subr.mxu0 0.0
        %932 = vmatpush1.msra.mxu0 0.0
        %933 = vmatprep.subr.mxu0 0.0
        %934 = vmatpush1.msra.mxu0 0.0
        %935 = vmatprep.subr.mxu0 0.0
        %936 = vmatpush1.msra.mxu0 0.0
        %937 = vmatprep.subr.mxu0 0.0
        %938 = vmatpush1.msra.mxu0 0.0
        %939 = vmatprep.subr.mxu0 0.0
        %940 = vmatpush1.msra.mxu0 0.0
        %941 = vmatprep.subr.mxu0 0.0
        %942 = vmatpush1.msra.mxu0 0.0
        %943 = vmatprep.mubr.f32.mxu0 0.0
        %944 = vmatmul.mubr.f32.gmra.mrb[0].mxu0 %v806
        %v945 = vpop.f32.mrb[0].mxu0
        %v946 = vadd.f32 0.0, %v945
        %v947 = vpop.f32.mrb[0].mxu0
        %948 = vdwg.mxu0
        %v949 = vadd.f32 %v785, %v875
        %v950 = vadd.f32 %v786, %v877
        %v951 = vadd.f32 %v787, %v946
        %s952 = scalar_lea.vmem %s0, 40
        %v953 = vld [vmem:[%s952] sm:$0xff]
        %954 = vrot.lane.b32.xlu0 %v148, 108
        %v955 = vpop.permute.xlu0 %954
        %956 = vrot.lane.b32.xlu0 %v149, 108
        %v957 = vpop.permute.xlu0 %956
        %958 = vrot.lane.b32.xlu0 %v150, 108
        %v959 = vpop.permute.xlu0 %958
        %960 = vrot.lane.b32.xlu0 %v151, 108
        %v961 = vpop.permute.xlu0 %960
        %vm962 = vcmask 883712
        %v963 = vsel %vm962, %v955, %v957
        %v964 = vsel %vm962, %v957, %v959
        %v965 = vsel %vm962, %v959, %v961
        %v970 = vsel %vm171, %v953, 0
        %972 = vmatprep.subr.mxu0 %v964
        %973 = vmatpush1.msra.mxu0 %v963
        %974 = vmatprep.subr.mxu0 0.0
        %975 = vmatpush1.msra.mxu0 0.0
        %976 = vmatprep.subr.mxu0 0.0
        %977 = vmatpush1.msra.mxu0 0.0
        %978 = vmatprep.subr.mxu0 0.0
        %979 = vmatpush1.msra.mxu0 0.0
        %980 = vmatprep.subr.mxu0 0.0
        %981 = vmatpush1.msra.mxu0 0.0
        %982 = vmatprep.subr.mxu0 0.0
        %983 = vmatpush1.msra.mxu0 0.0
        %984 = vmatprep.subr.mxu0 0.0
        %985 = vmatpush1.msra.mxu0 0.0
        %986 = vmatprep.subr.mxu0 0.0
        %987 = vmatpush1.msra.mxu0 0.0
        %988 = vmatprep.subr.mxu0 0.0
        %989 = vmatpush1.msra.mxu0 0.0
        %990 = vmatprep.subr.mxu0 0.0
        %991 = vmatpush1.msra.mxu0 0.0
        %992 = vmatprep.subr.mxu0 0.0
        %993 = vmatpush1.msra.mxu0 0.0
        %994 = vmatprep.subr.mxu0 0.0
        %995 = vmatpush1.msra.mxu0 0.0
        %996 = vmatprep.subr.mxu0 0.0
        %997 = vmatpush1.msra.mxu0 0.0
        %998 = vmatprep.subr.mxu0 0.0
        %999 = vmatpush1.msra.mxu0 0.0
        %1000 = vmatprep.subr.mxu0 0.0
        %1001 = vmatpush1.msra.mxu0 0.0
        %1002 = vmatprep.subr.mxu0 0.0
        %1003 = vmatpush1.msra.mxu0 0.0
        %1004 = vmatprep.subr.mxu0 0.0
        %1005 = vmatpush1.msra.mxu0 0.0
        %1006 = vmatprep.subr.mxu0 0.0
        %1007 = vmatpush1.msra.mxu0 0.0
        %1008 = vmatprep.subr.mxu0 0.0
        %1009 = vmatpush1.msra.mxu0 0.0
        %1010 = vmatprep.subr.mxu0 0.0
        %1011 = vmatpush1.msra.mxu0 0.0
        %1012 = vmatprep.subr.mxu0 0.0
        %1013 = vmatpush1.msra.mxu0 0.0
        %1014 = vmatprep.subr.mxu0 0.0
        %1015 = vmatpush1.msra.mxu0 0.0
        %1016 = vmatprep.subr.mxu0 0.0
        %1017 = vmatpush1.msra.mxu0 0.0
        %1018 = vmatprep.subr.mxu0 0.0
        %1019 = vmatpush1.msra.mxu0 0.0
        %1020 = vmatprep.subr.mxu0 0.0
        %1021 = vmatpush1.msra.mxu0 0.0
        %1022 = vmatprep.subr.mxu0 0.0
        %1023 = vmatpush1.msra.mxu0 0.0
        %1024 = vmatprep.subr.mxu0 0.0
        %1025 = vmatpush1.msra.mxu0 0.0
        %1026 = vmatprep.subr.mxu0 0.0
        %1027 = vmatpush1.msra.mxu0 0.0
        %1028 = vmatprep.subr.mxu0 0.0
        %1029 = vmatpush1.msra.mxu0 0.0
        %1030 = vmatprep.subr.mxu0 0.0
        %1031 = vmatpush1.msra.mxu0 0.0
        %1032 = vmatprep.subr.mxu0 0.0
        %1033 = vmatpush1.msra.mxu0 0.0
        %1034 = vmatprep.subr.mxu0 0.0
        %1035 = vmatpush1.msra.mxu0 0.0
        %1036 = vmatprep.mubr.f32.mxu0 0.0
        %1037 = vmatmul.mubr.f32.gmra.mrb[0].mxu0 %v970
        %v1038 = vpop.f32.mrb[0].mxu0
        %v1039 = vadd.f32 0.0, %v1038
        %v1040 = vpop.f32.mrb[0].mxu0
        %v1041 = vadd.f32 0.0, %v1040
        %1042 = vdwg.mxu0
        %1043 = vmatprep.subr.mxu0 0.0
        %1044 = vmatpush1.msra.mxu0 %v965
        %1045 = vmatprep.subr.mxu0 0.0
        %1046 = vmatpush1.msra.mxu0 0.0
        %1047 = vmatprep.subr.mxu0 0.0
        %1048 = vmatpush1.msra.mxu0 0.0
        %1049 = vmatprep.subr.mxu0 0.0
        %1050 = vmatpush1.msra.mxu0 0.0
        %1051 = vmatprep.subr.mxu0 0.0
        %1052 = vmatpush1.msra.mxu0 0.0
        %1053 = vmatprep.subr.mxu0 0.0
        %1054 = vmatpush1.msra.mxu0 0.0
        %1055 = vmatprep.subr.mxu0 0.0
        %1056 = vmatpush1.msra.mxu0 0.0
        %1057 = vmatprep.subr.mxu0 0.0
        %1058 = vmatpush1.msra.mxu0 0.0
        %1059 = vmatprep.subr.mxu0 0.0
        %1060 = vmatpush1.msra.mxu0 0.0
        %1061 = vmatprep.subr.mxu0 0.0
        %1062 = vmatpush1.msra.mxu0 0.0
        %1063 = vmatprep.subr.mxu0 0.0
        %1064 = vmatpush1.msra.mxu0 0.0
        %1065 = vmatprep.subr.mxu0 0.0
        %1066 = vmatpush1.msra.mxu0 0.0
        %1067 = vmatprep.subr.mxu0 0.0
        %1068 = vmatpush1.msra.mxu0 0.0
        %1069 = vmatprep.subr.mxu0 0.0
        %1070 = vmatpush1.msra.mxu0 0.0
        %1071 = vmatprep.subr.mxu0 0.0
        %1072 = vmatpush1.msra.mxu0 0.0
        %1073 = vmatprep.subr.mxu0 0.0
        %1074 = vmatpush1.msra.mxu0 0.0
        %1075 = vmatprep.subr.mxu0 0.0
        %1076 = vmatpush1.msra.mxu0 0.0
        %1077 = vmatprep.subr.mxu0 0.0
        %1078 = vmatpush1.msra.mxu0 0.0
        %1079 = vmatprep.subr.mxu0 0.0
        %1080 = vmatpush1.msra.mxu0 0.0
        %1081 = vmatprep.subr.mxu0 0.0
        %1082 = vmatpush1.msra.mxu0 0.0
        %1083 = vmatprep.subr.mxu0 0.0
        %1084 = vmatpush1.msra.mxu0 0.0
        %1085 = vmatprep.subr.mxu0 0.0
        %1086 = vmatpush1.msra.mxu0 0.0
        %1087 = vmatprep.subr.mxu0 0.0
        %1088 = vmatpush1.msra.mxu0 0.0
        %1089 = vmatprep.subr.mxu0 0.0
        %1090 = vmatpush1.msra.mxu0 0.0
        %1091 = vmatprep.subr.mxu0 0.0
        %1092 = vmatpush1.msra.mxu0 0.0
        %1093 = vmatprep.subr.mxu0 0.0
        %1094 = vmatpush1.msra.mxu0 0.0
        %1095 = vmatprep.subr.mxu0 0.0
        %1096 = vmatpush1.msra.mxu0 0.0
        %1097 = vmatprep.subr.mxu0 0.0
        %1098 = vmatpush1.msra.mxu0 0.0
        %1099 = vmatprep.subr.mxu0 0.0
        %1100 = vmatpush1.msra.mxu0 0.0
        %1101 = vmatprep.subr.mxu0 0.0
        %1102 = vmatpush1.msra.mxu0 0.0
        %1103 = vmatprep.subr.mxu0 0.0
        %1104 = vmatpush1.msra.mxu0 0.0
        %1105 = vmatprep.subr.mxu0 0.0
        %1106 = vmatpush1.msra.mxu0 0.0
        %1107 = vmatprep.mubr.f32.mxu0 0.0
        %1108 = vmatmul.mubr.f32.gmra.mrb[0].mxu0 %v970
        %v1109 = vpop.f32.mrb[0].mxu0
        %v1110 = vadd.f32 0.0, %v1109
        %v1111 = vpop.f32.mrb[0].mxu0
        %1112 = vdwg.mxu0
        %v1113 = vadd.f32 %v949, %v1039
        %v1114 = vadd.f32 %v950, %v1041
        %v1115 = vadd.f32 %v951, %v1110
        %s1116 = scalar_lea.vmem %s0, 48
        %v1117 = vld [vmem:[%s1116] sm:$0xff]
        %1118 = vrot.lane.b32.xlu0 %v148, 92
        %v1119 = vpop.permute.xlu0 %1118
        %1120 = vrot.lane.b32.xlu0 %v149, 92
        %v1121 = vpop.permute.xlu0 %1120
        %1122 = vrot.lane.b32.xlu0 %v150, 92
        %v1123 = vpop.permute.xlu0 %1122
        %1124 = vrot.lane.b32.xlu0 %v151, 92
        %v1125 = vpop.permute.xlu0 %1124
        %vm1126 = vcmask 752640
        %v1127 = vsel %vm1126, %v1119, %v1121
        %v1128 = vsel %vm1126, %v1121, %v1123
        %v1129 = vsel %vm1126, %v1123, %v1125
        %v1134 = vsel %vm171, %v1117, 0
        %1136 = vmatprep.subr.mxu0 %v1128
        %1137 = vmatpush1.msra.mxu0 %v1127
        %1138 = vmatprep.subr.mxu0 0.0
        %1139 = vmatpush1.msra.mxu0 0.0
        %1140 = vmatprep.subr.mxu0 0.0
        %1141 = vmatpush1.msra.mxu0 0.0
        %1142 = vmatprep.subr.mxu0 0.0
        %1143 = vmatpush1.msra.mxu0 0.0
        %1144 = vmatprep.subr.mxu0 0.0
        %1145 = vmatpush1.msra.mxu0 0.0
        %1146 = vmatprep.subr.mxu0 0.0
        %1147 = vmatpush1.msra.mxu0 0.0
        %1148 = vmatprep.subr.mxu0 0.0
        %1149 = vmatpush1.msra.mxu0 0.0
        %1150 = vmatprep.subr.mxu0 0.0
        %1151 = vmatpush1.msra.mxu0 0.0
        %1152 = vmatprep.subr.mxu0 0.0
        %1153 = vmatpush1.msra.mxu0 0.0
        %1154 = vmatprep.subr.mxu0 0.0
        %1155 = vmatpush1.msra.mxu0 0.0
        %1156 = vmatprep.subr.mxu0 0.0
        %1157 = vmatpush1.msra.mxu0 0.0
        %1158 = vmatprep.subr.mxu0 0.0
        %1159 = vmatpush1.msra.mxu0 0.0
        %1160 = vmatprep.subr.mxu0 0.0
        %1161 = vmatpush1.msra.mxu0 0.0
        %1162 = vmatprep.subr.mxu0 0.0
        %1163 = vmatpush1.msra.mxu0 0.0
        %1164 = vmatprep.subr.mxu0 0.0
        %1165 = vmatpush1.msra.mxu0 0.0
        %1166 = vmatprep.subr.mxu0 0.0
        %1167 = vmatpush1.msra.mxu0 0.0
        %1168 = vmatprep.subr.mxu0 0.0
        %1169 = vmatpush1.msra.mxu0 0.0
        %1170 = vmatprep.subr.mxu0 0.0
        %1171 = vmatpush1.msra.mxu0 0.0
        %1172 = vmatprep.subr.mxu0 0.0
        %1173 = vmatpush1.msra.mxu0 0.0
        %1174 = vmatprep.subr.mxu0 0.0
        %1175 = vmatpush1.msra.mxu0 0.0
        %1176 = vmatprep.subr.mxu0 0.0
        %1177 = vmatpush1.msra.mxu0 0.0
        %1178 = vmatprep.subr.mxu0 0.0
        %1179 = vmatpush1.msra.mxu0 0.0
        %1180 = vmatprep.subr.mxu0 0.0
        %1181 = vmatpush1.msra.mxu0 0.0
        %1182 = vmatprep.subr.mxu0 0.0
        %1183 = vmatpush1.msra.mxu0 0.0
        %1184 = vmatprep.subr.mxu0 0.0
        %1185 = vmatpush1.msra.mxu0 0.0
        %1186 = vmatprep.subr.mxu0 0.0
        %1187 = vmatpush1.msra.mxu0 0.0
        %1188 = vmatprep.subr.mxu0 0.0
        %1189 = vmatpush1.msra.mxu0 0.0
        %1190 = vmatprep.subr.mxu0 0.0
        %1191 = vmatpush1.msra.mxu0 0.0
        %1192 = vmatprep.subr.mxu0 0.0
        %1193 = vmatpush1.msra.mxu0 0.0
        %1194 = vmatprep.subr.mxu0 0.0
        %1195 = vmatpush1.msra.mxu0 0.0
        %1196 = vmatprep.subr.mxu0 0.0
        %1197 = vmatpush1.msra.mxu0 0.0
        %1198 = vmatprep.subr.mxu0 0.0
        %1199 = vmatpush1.msra.mxu0 0.0
        %1200 = vmatprep.mubr.f32.mxu0 0.0
        %1201 = vmatmul.mubr.f32.gmra.mrb[0].mxu0 %v1134
        %v1202 = vpop.f32.mrb[0].mxu0
        %v1203 = vadd.f32 0.0, %v1202
        %v1204 = vpop.f32.mrb[0].mxu0
        %v1205 = vadd.f32 0.0, %v1204
        %1206 = vdwg.mxu0
        %1207 = vmatprep.subr.mxu0 0.0
        %1208 = vmatpush1.msra.mxu0 %v1129
        %1209 = vmatprep.subr.mxu0 0.0
        %1210 = vmatpush1.msra.mxu0 0.0
        %1211 = vmatprep.subr.mxu0 0.0
        %1212 = vmatpush1.msra.mxu0 0.0
        %1213 = vmatprep.subr.mxu0 0.0
        %1214 = vmatpush1.msra.mxu0 0.0
        %1215 = vmatprep.subr.mxu0 0.0
        %1216 = vmatpush1.msra.mxu0 0.0
        %1217 = vmatprep.subr.mxu0 0.0
        %1218 = vmatpush1.msra.mxu0 0.0
        %1219 = vmatprep.subr.mxu0 0.0
        %1220 = vmatpush1.msra.mxu0 0.0
        %1221 = vmatprep.subr.mxu0 0.0
        %1222 = vmatpush1.msra.mxu0 0.0
        %1223 = vmatprep.subr.mxu0 0.0
        %1224 = vmatpush1.msra.mxu0 0.0
        %1225 = vmatprep.subr.mxu0 0.0
        %1226 = vmatpush1.msra.mxu0 0.0
        %1227 = vmatprep.subr.mxu0 0.0
        %1228 = vmatpush1.msra.mxu0 0.0
        %1229 = vmatprep.subr.mxu0 0.0
        %1230 = vmatpush1.msra.mxu0 0.0
        %1231 = vmatprep.subr.mxu0 0.0
        %1232 = vmatpush1.msra.mxu0 0.0
        %1233 = vmatprep.subr.mxu0 0.0
        %1234 = vmatpush1.msra.mxu0 0.0
        %1235 = vmatprep.subr.mxu0 0.0
        %1236 = vmatpush1.msra.mxu0 0.0
        %1237 = vmatprep.subr.mxu0 0.0
        %1238 = vmatpush1.msra.mxu0 0.0
        %1239 = vmatprep.subr.mxu0 0.0
        %1240 = vmatpush1.msra.mxu0 0.0
        %1241 = vmatprep.subr.mxu0 0.0
        %1242 = vmatpush1.msra.mxu0 0.0
        %1243 = vmatprep.subr.mxu0 0.0
        %1244 = vmatpush1.msra.mxu0 0.0
        %1245 = vmatprep.subr.mxu0 0.0
        %1246 = vmatpush1.msra.mxu0 0.0
        %1247 = vmatprep.subr.mxu0 0.0
        %1248 = vmatpush1.msra.mxu0 0.0
        %1249 = vmatprep.subr.mxu0 0.0
        %1250 = vmatpush1.msra.mxu0 0.0
        %1251 = vmatprep.subr.mxu0 0.0
        %1252 = vmatpush1.msra.mxu0 0.0
        %1253 = vmatprep.subr.mxu0 0.0
        %1254 = vmatpush1.msra.mxu0 0.0
        %1255 = vmatprep.subr.mxu0 0.0
        %1256 = vmatpush1.msra.mxu0 0.0
        %1257 = vmatprep.subr.mxu0 0.0
        %1258 = vmatpush1.msra.mxu0 0.0
        %1259 = vmatprep.subr.mxu0 0.0
        %1260 = vmatpush1.msra.mxu0 0.0
        %1261 = vmatprep.subr.mxu0 0.0
        %1262 = vmatpush1.msra.mxu0 0.0
        %1263 = vmatprep.subr.mxu0 0.0
        %1264 = vmatpush1.msra.mxu0 0.0
        %1265 = vmatprep.subr.mxu0 0.0
        %1266 = vmatpush1.msra.mxu0 0.0
        %1267 = vmatprep.subr.mxu0 0.0
        %1268 = vmatpush1.msra.mxu0 0.0
        %1269 = vmatprep.subr.mxu0 0.0
        %1270 = vmatpush1.msra.mxu0 0.0
        %1271 = vmatprep.mubr.f32.mxu0 0.0
        %1272 = vmatmul.mubr.f32.gmra.mrb[0].mxu0 %v1134
        %v1273 = vpop.f32.mrb[0].mxu0
        %v1274 = vadd.f32 0.0, %v1273
        %v1275 = vpop.f32.mrb[0].mxu0
        %1276 = vdwg.mxu0
        %v1277 = vadd.f32 %v1113, %v1203
        %v1278 = vadd.f32 %v1114, %v1205
        %v1279 = vadd.f32 %v1115, %v1274
        %s1280 = scalar_lea.vmem %s0, 56
        %v1281 = vld [vmem:[%s1280] sm:$0xff]
        %1282 = vrot.lane.b32.xlu0 %v148, 91
        %v1283 = vpop.permute.xlu0 %1282
        %1284 = vrot.lane.b32.xlu0 %v149, 91
        %v1285 = vpop.permute.xlu0 %1284
        %1286 = vrot.lane.b32.xlu0 %v150, 91
        %v1287 = vpop.permute.xlu0 %1286
        %1288 = vrot.lane.b32.xlu0 %v151, 91
        %v1289 = vpop.permute.xlu0 %1288
        %vm1290 = vcmask 744448
        %v1291 = vsel %vm1290, %v1283, %v1285
        %v1292 = vsel %vm1290, %v1285, %v1287
        %v1293 = vsel %vm1290, %v1287, %v1289
        %v1298 = vsel %vm171, %v1281, 0
        %1300 = vmatprep.subr.mxu0 %v1292
        %1301 = vmatpush1.msra.mxu0 %v1291
        %1302 = vmatprep.subr.mxu0 0.0
        %1303 = vmatpush1.msra.mxu0 0.0
        %1304 = vmatprep.subr.mxu0 0.0
        %1305 = vmatpush1.msra.mxu0 0.0
        %1306 = vmatprep.subr.mxu0 0.0
        %1307 = vmatpush1.msra.mxu0 0.0
        %1308 = vmatprep.subr.mxu0 0.0
        %1309 = vmatpush1.msra.mxu0 0.0
        %1310 = vmatprep.subr.mxu0 0.0
        %1311 = vmatpush1.msra.mxu0 0.0
        %1312 = vmatprep.subr.mxu0 0.0
        %1313 = vmatpush1.msra.mxu0 0.0
        %1314 = vmatprep.subr.mxu0 0.0
        %1315 = vmatpush1.msra.mxu0 0.0
        %1316 = vmatprep.subr.mxu0 0.0
        %1317 = vmatpush1.msra.mxu0 0.0
        %1318 = vmatprep.subr.mxu0 0.0
        %1319 = vmatpush1.msra.mxu0 0.0
        %1320 = vmatprep.subr.mxu0 0.0
        %1321 = vmatpush1.msra.mxu0 0.0
        %1322 = vmatprep.subr.mxu0 0.0
        %1323 = vmatpush1.msra.mxu0 0.0
        %1324 = vmatprep.subr.mxu0 0.0
        %1325 = vmatpush1.msra.mxu0 0.0
        %1326 = vmatprep.subr.mxu0 0.0
        %1327 = vmatpush1.msra.mxu0 0.0
        %1328 = vmatprep.subr.mxu0 0.0
        %1329 = vmatpush1.msra.mxu0 0.0
        %1330 = vmatprep.subr.mxu0 0.0
        %1331 = vmatpush1.msra.mxu0 0.0
        %1332 = vmatprep.subr.mxu0 0.0
        %1333 = vmatpush1.msra.mxu0 0.0
        %1334 = vmatprep.subr.mxu0 0.0
        %1335 = vmatpush1.msra.mxu0 0.0
        %1336 = vmatprep.subr.mxu0 0.0
        %1337 = vmatpush1.msra.mxu0 0.0
        %1338 = vmatprep.subr.mxu0 0.0
        %1339 = vmatpush1.msra.mxu0 0.0
        %1340 = vmatprep.subr.mxu0 0.0
        %1341 = vmatpush1.msra.mxu0 0.0
        %1342 = vmatprep.subr.mxu0 0.0
        %1343 = vmatpush1.msra.mxu0 0.0
        %1344 = vmatprep.subr.mxu0 0.0
        %1345 = vmatpush1.msra.mxu0 0.0
        %1346 = vmatprep.subr.mxu0 0.0
        %1347 = vmatpush1.msra.mxu0 0.0
        %1348 = vmatprep.subr.mxu0 0.0
        %1349 = vmatpush1.msra.mxu0 0.0
        %1350 = vmatprep.subr.mxu0 0.0
        %1351 = vmatpush1.msra.mxu0 0.0
        %1352 = vmatprep.subr.mxu0 0.0
        %1353 = vmatpush1.msra.mxu0 0.0
        %1354 = vmatprep.subr.mxu0 0.0
        %1355 = vmatpush1.msra.mxu0 0.0
        %1356 = vmatprep.subr.mxu0 0.0
        %1357 = vmatpush1.msra.mxu0 0.0
        %1358 = vmatprep.subr.mxu0 0.0
        %1359 = vmatpush1.msra.mxu0 0.0
        %1360 = vmatprep.subr.mxu0 0.0
        %1361 = vmatpush1.msra.mxu0 0.0
        %1362 = vmatprep.subr.mxu0 0.0
        %1363 = vmatpush1.msra.mxu0 0.0
        %1364 = vmatprep.mubr.f32.mxu0 0.0
        %1365 = vmatmul.mubr.f32.gmra.mrb[0].mxu0 %v1298
        %v1366 = vpop.f32.mrb[0].mxu0
        %v1367 = vadd.f32 0.0, %v1366
        %v1368 = vpop.f32.mrb[0].mxu0
        %v1369 = vadd.f32 0.0, %v1368
        %1370 = vdwg.mxu0
        %1371 = vmatprep.subr.mxu0 0.0
        %1372 = vmatpush1.msra.mxu0 %v1293
        %1373 = vmatprep.subr.mxu0 0.0
        %1374 = vmatpush1.msra.mxu0 0.0
        %1375 = vmatprep.subr.mxu0 0.0
        %1376 = vmatpush1.msra.mxu0 0.0
        %1377 = vmatprep.subr.mxu0 0.0
        %1378 = vmatpush1.msra.mxu0 0.0
        %1379 = vmatprep.subr.mxu0 0.0
        %1380 = vmatpush1.msra.mxu0 0.0
        %1381 = vmatprep.subr.mxu0 0.0
        %1382 = vmatpush1.msra.mxu0 0.0
        %1383 = vmatprep.subr.mxu0 0.0
        %1384 = vmatpush1.msra.mxu0 0.0
        %1385 = vmatprep.subr.mxu0 0.0
        %1386 = vmatpush1.msra.mxu0 0.0
        %1387 = vmatprep.subr.mxu0 0.0
        %1388 = vmatpush1.msra.mxu0 0.0
        %1389 = vmatprep.subr.mxu0 0.0
        %1390 = vmatpush1.msra.mxu0 0.0
        %1391 = vmatprep.subr.mxu0 0.0
        %1392 = vmatpush1.msra.mxu0 0.0
        %1393 = vmatprep.subr.mxu0 0.0
        %1394 = vmatpush1.msra.mxu0 0.0
        %1395 = vmatprep.subr.mxu0 0.0
        %1396 = vmatpush1.msra.mxu0 0.0
        %1397 = vmatprep.subr.mxu0 0.0
        %1398 = vmatpush1.msra.mxu0 0.0
        %1399 = vmatprep.subr.mxu0 0.0
        %1400 = vmatpush1.msra.mxu0 0.0
        %1401 = vmatprep.subr.mxu0 0.0
        %1402 = vmatpush1.msra.mxu0 0.0
        %1403 = vmatprep.subr.mxu0 0.0
        %1404 = vmatpush1.msra.mxu0 0.0
        %1405 = vmatprep.subr.mxu0 0.0
        %1406 = vmatpush1.msra.mxu0 0.0
        %1407 = vmatprep.subr.mxu0 0.0
        %1408 = vmatpush1.msra.mxu0 0.0
        %1409 = vmatprep.subr.mxu0 0.0
        %1410 = vmatpush1.msra.mxu0 0.0
        %1411 = vmatprep.subr.mxu0 0.0
        %1412 = vmatpush1.msra.mxu0 0.0
        %1413 = vmatprep.subr.mxu0 0.0
        %1414 = vmatpush1.msra.mxu0 0.0
        %1415 = vmatprep.subr.mxu0 0.0
        %1416 = vmatpush1.msra.mxu0 0.0
        %1417 = vmatprep.subr.mxu0 0.0
        %1418 = vmatpush1.msra.mxu0 0.0
        %1419 = vmatprep.subr.mxu0 0.0
        %1420 = vmatpush1.msra.mxu0 0.0
        %1421 = vmatprep.subr.mxu0 0.0
        %1422 = vmatpush1.msra.mxu0 0.0
        %1423 = vmatprep.subr.mxu0 0.0
        %1424 = vmatpush1.msra.mxu0 0.0
        %1425 = vmatprep.subr.mxu0 0.0
        %1426 = vmatpush1.msra.mxu0 0.0
        %1427 = vmatprep.subr.mxu0 0.0
        %1428 = vmatpush1.msra.mxu0 0.0
        %1429 = vmatprep.subr.mxu0 0.0
        %1430 = vmatpush1.msra.mxu0 0.0
        %1431 = vmatprep.subr.mxu0 0.0
        %1432 = vmatpush1.msra.mxu0 0.0
        %1433 = vmatprep.subr.mxu0 0.0
        %1434 = vmatpush1.msra.mxu0 0.0
        %1435 = vmatprep.mubr.f32.mxu0 0.0
        %1436 = vmatmul.mubr.f32.gmra.mrb[0].mxu0 %v1298
        %v1437 = vpop.f32.mrb[0].mxu0
        %v1438 = vadd.f32 0.0, %v1437
        %v1439 = vpop.f32.mrb[0].mxu0
        %1440 = vdwg.mxu0
        %v1441 = vadd.f32 %v1277, %v1367
        %v1442 = vadd.f32 %v1278, %v1369
        %v1443 = vadd.f32 %v1279, %v1438
        %s1444 = scalar_lea.vmem %s0, 64
        %v1445 = vld [vmem:[%s1444] sm:$0xff]
        %1446 = vrot.lane.b32.xlu0 %v148, 90
        %v1447 = vpop.permute.xlu0 %1446
        %1448 = vrot.lane.b32.xlu0 %v149, 90
        %v1449 = vpop.permute.xlu0 %1448
        %1450 = vrot.lane.b32.xlu0 %v150, 90
        %v1451 = vpop.permute.xlu0 %1450
        %1452 = vrot.lane.b32.xlu0 %v151, 90
        %v1453 = vpop.permute.xlu0 %1452
        %vm1454 = vcmask 736256
        %v1455 = vsel %vm1454, %v1447, %v1449
        %v1456 = vsel %vm1454, %v1449, %v1451
        %v1457 = vsel %vm1454, %v1451, %v1453
        %v1462 = vsel %vm171, %v1445, 0
        %1464 = vmatprep.subr.mxu0 %v1456
        %1465 = vmatpush1.msra.mxu0 %v1455
        %1466 = vmatprep.subr.mxu0 0.0
        %1467 = vmatpush1.msra.mxu0 0.0
        %1468 = vmatprep.subr.mxu0 0.0
        %1469 = vmatpush1.msra.mxu0 0.0
        %1470 = vmatprep.subr.mxu0 0.0
        %1471 = vmatpush1.msra.mxu0 0.0
        %1472 = vmatprep.subr.mxu0 0.0
        %1473 = vmatpush1.msra.mxu0 0.0
        %1474 = vmatprep.subr.mxu0 0.0
        %1475 = vmatpush1.msra.mxu0 0.0
        %1476 = vmatprep.subr.mxu0 0.0
        %1477 = vmatpush1.msra.mxu0 0.0
        %1478 = vmatprep.subr.mxu0 0.0
        %1479 = vmatpush1.msra.mxu0 0.0
        %1480 = vmatprep.subr.mxu0 0.0
        %1481 = vmatpush1.msra.mxu0 0.0
        %1482 = vmatprep.subr.mxu0 0.0
        %1483 = vmatpush1.msra.mxu0 0.0
        %1484 = vmatprep.subr.mxu0 0.0
        %1485 = vmatpush1.msra.mxu0 0.0
        %1486 = vmatprep.subr.mxu0 0.0
        %1487 = vmatpush1.msra.mxu0 0.0
        %1488 = vmatprep.subr.mxu0 0.0
        %1489 = vmatpush1.msra.mxu0 0.0
        %1490 = vmatprep.subr.mxu0 0.0
        %1491 = vmatpush1.msra.mxu0 0.0
        %1492 = vmatprep.subr.mxu0 0.0
        %1493 = vmatpush1.msra.mxu0 0.0
        %1494 = vmatprep.subr.mxu0 0.0
        %1495 = vmatpush1.msra.mxu0 0.0
        %1496 = vmatprep.subr.mxu0 0.0
        %1497 = vmatpush1.msra.mxu0 0.0
        %1498 = vmatprep.subr.mxu0 0.0
        %1499 = vmatpush1.msra.mxu0 0.0
        %1500 = vmatprep.subr.mxu0 0.0
        %1501 = vmatpush1.msra.mxu0 0.0
        %1502 = vmatprep.subr.mxu0 0.0
        %1503 = vmatpush1.msra.mxu0 0.0
        %1504 = vmatprep.subr.mxu0 0.0
        %1505 = vmatpush1.msra.mxu0 0.0
        %1506 = vmatprep.subr.mxu0 0.0
        %1507 = vmatpush1.msra.mxu0 0.0
        %1508 = vmatprep.subr.mxu0 0.0
        %1509 = vmatpush1.msra.mxu0 0.0
        %1510 = vmatprep.subr.mxu0 0.0
        %1511 = vmatpush1.msra.mxu0 0.0
        %1512 = vmatprep.subr.mxu0 0.0
        %1513 = vmatpush1.msra.mxu0 0.0
        %1514 = vmatprep.subr.mxu0 0.0
        %1515 = vmatpush1.msra.mxu0 0.0
        %1516 = vmatprep.subr.mxu0 0.0
        %1517 = vmatpush1.msra.mxu0 0.0
        %1518 = vmatprep.subr.mxu0 0.0
        %1519 = vmatpush1.msra.mxu0 0.0
        %1520 = vmatprep.subr.mxu0 0.0
        %1521 = vmatpush1.msra.mxu0 0.0
        %1522 = vmatprep.subr.mxu0 0.0
        %1523 = vmatpush1.msra.mxu0 0.0
        %1524 = vmatprep.subr.mxu0 0.0
        %1525 = vmatpush1.msra.mxu0 0.0
        %1526 = vmatprep.subr.mxu0 0.0
        %1527 = vmatpush1.msra.mxu0 0.0
        %1528 = vmatprep.mubr.f32.mxu0 0.0
        %1529 = vmatmul.mubr.f32.gmra.mrb[0].mxu0 %v1462
        %v1530 = vpop.f32.mrb[0].mxu0
        %v1531 = vadd.f32 0.0, %v1530
        %v1532 = vpop.f32.mrb[0].mxu0
        %v1533 = vadd.f32 0.0, %v1532
        %1534 = vdwg.mxu0
        %1535 = vmatprep.subr.mxu0 0.0
        %1536 = vmatpush1.msra.mxu0 %v1457
        %1537 = vmatprep.subr.mxu0 0.0
        %1538 = vmatpush1.msra.mxu0 0.0
        %1539 = vmatprep.subr.mxu0 0.0
        %1540 = vmatpush1.msra.mxu0 0.0
        %1541 = vmatprep.subr.mxu0 0.0
        %1542 = vmatpush1.msra.mxu0 0.0
        %1543 = vmatprep.subr.mxu0 0.0
        %1544 = vmatpush1.msra.mxu0 0.0
        %1545 = vmatprep.subr.mxu0 0.0
        %1546 = vmatpush1.msra.mxu0 0.0
        %1547 = vmatprep.subr.mxu0 0.0
        %1548 = vmatpush1.msra.mxu0 0.0
        %1549 = vmatprep.subr.mxu0 0.0
        %1550 = vmatpush1.msra.mxu0 0.0
        %1551 = vmatprep.subr.mxu0 0.0
        %1552 = vmatpush1.msra.mxu0 0.0
        %1553 = vmatprep.subr.mxu0 0.0
        %1554 = vmatpush1.msra.mxu0 0.0
        %1555 = vmatprep.subr.mxu0 0.0
        %1556 = vmatpush1.msra.mxu0 0.0
        %1557 = vmatprep.subr.mxu0 0.0
        %1558 = vmatpush1.msra.mxu0 0.0
        %1559 = vmatprep.subr.mxu0 0.0
        %1560 = vmatpush1.msra.mxu0 0.0
        %1561 = vmatprep.subr.mxu0 0.0
        %1562 = vmatpush1.msra.mxu0 0.0
        %1563 = vmatprep.subr.mxu0 0.0
        %1564 = vmatpush1.msra.mxu0 0.0
        %1565 = vmatprep.subr.mxu0 0.0
        %1566 = vmatpush1.msra.mxu0 0.0
        %1567 = vmatprep.subr.mxu0 0.0
        %1568 = vmatpush1.msra.mxu0 0.0
        %1569 = vmatprep.subr.mxu0 0.0
        %1570 = vmatpush1.msra.mxu0 0.0
        %1571 = vmatprep.subr.mxu0 0.0
        %1572 = vmatpush1.msra.mxu0 0.0
        %1573 = vmatprep.subr.mxu0 0.0
        %1574 = vmatpush1.msra.mxu0 0.0
        %1575 = vmatprep.subr.mxu0 0.0
        %1576 = vmatpush1.msra.mxu0 0.0
        %1577 = vmatprep.subr.mxu0 0.0
        %1578 = vmatpush1.msra.mxu0 0.0
        %1579 = vmatprep.subr.mxu0 0.0
        %1580 = vmatpush1.msra.mxu0 0.0
        %1581 = vmatprep.subr.mxu0 0.0
        %1582 = vmatpush1.msra.mxu0 0.0
        %1583 = vmatprep.subr.mxu0 0.0
        %1584 = vmatpush1.msra.mxu0 0.0
        %1585 = vmatprep.subr.mxu0 0.0
        %1586 = vmatpush1.msra.mxu0 0.0
        %1587 = vmatprep.subr.mxu0 0.0
        %1588 = vmatpush1.msra.mxu0 0.0
        %1589 = vmatprep.subr.mxu0 0.0
        %1590 = vmatpush1.msra.mxu0 0.0
        %1591 = vmatprep.subr.mxu0 0.0
        %1592 = vmatpush1.msra.mxu0 0.0
        %1593 = vmatprep.subr.mxu0 0.0
        %1594 = vmatpush1.msra.mxu0 0.0
        %1595 = vmatprep.subr.mxu0 0.0
        %1596 = vmatpush1.msra.mxu0 0.0
        %1597 = vmatprep.subr.mxu0 0.0
        %1598 = vmatpush1.msra.mxu0 0.0
        %1599 = vmatprep.mubr.f32.mxu0 0.0
        %1600 = vmatmul.mubr.f32.gmra.mrb[0].mxu0 %v1462
        %v1601 = vpop.f32.mrb[0].mxu0
        %v1602 = vadd.f32 0.0, %v1601
        %v1603 = vpop.f32.mrb[0].mxu0
        %1604 = vdwg.mxu0
        %v1605 = vadd.f32 %v1441, %v1531
        %v1606 = vadd.f32 %v1442, %v1533
        %v1607 = vadd.f32 %v1443, %v1602
        %1608 = vst [vmem:[%s136] sm:$0xff] %v1605
        %1609 = vst [vmem:[%s136 + $0x8] sm:$0xff] %v1606
        %1610 = vst [vmem:[%s136 + $0x10] sm:$0xff] %v1607
        %s1611 = sand.u32 %s71, 1
        %s1612 = scalar_lea.sflag [#allocation3], %s1611
        %s1613 = sand.u32 %s71, 1
        %s1614 = smul.addr %s1613, 24
        %s1615 = scalar_lea.vmem [#allocation2], %s1614
        // Predicated region
        $region29: #{tpu_custom_call.1} parent=27 // pred_check
          %p1616 = pneg %p81
        $region30: #{tpu_custom_call.1} parent=27 // pred_check_branch
          %1618 = sbr.rel (%p1616) target = $region32
        $region31: #{tpu_custom_call.1} parent=27 // pred_region
          %s1620 = ssub.s32 384, 384
          %1621 = vsyncadd %s1612, %s1620
          %s1622 = smul.addr %s16, 3
          %s1623 = smul.addr %s1622, 128
          %s1624 = scalar_lea.hbm %s2, %s1623
          %s1626 = sshll.u32 %s1615, 4
          %s1627 = int_to_ptr.vmem [resolvable:$true] %s1626
          %1629 = dma.vmem_to_hbm [thread:$0]  %s1627, 384, %s1624, %s1612
        $region32: #{tpu_custom_call.1} parent=27 // pred_fallthru
          _
      $region28: #{tpu_custom_call.1} parent=5 // pred_fallthru
        _
      %p1630 = scmp.le.s32.totalorder 2, %s11
      // Predicated region
      $region33: #{tpu_custom_call.1} parent=5 // pred_check
        %p1631 = pneg %p1630
      $region34: #{tpu_custom_call.1} parent=5 // pred_check_branch
        %1633 = sbr.rel (%p1631) target = $region36
      $region35: #{tpu_custom_call.1} parent=5 // pred_region
        %s1634 = ssub.s32 %s11, 2
        // Predicated region
        $region37: #{tpu_custom_call.1} parent=35 // pred_check
          %p1635 = pneg %p87
        $region38: #{tpu_custom_call.1} parent=35 // pred_check_branch
          %1637 = sbr.rel (%p1635) target = $region40
        $region39: #{tpu_custom_call.1} parent=35 // pred_region
          %s1638 = sand.u32 %s72, 1
          %s1639 = scalar_lea.sflag [#allocation3], %s1638
          %s1640 = sand.u32 %s72, 1
          %s1641 = smul.addr %s1640, 24
          %s1642 = scalar_lea.vmem [#allocation2], %s1641
          %1643 = dma.done %s1639, 384
        $region40: #{tpu_custom_call.1} parent=35 // pred_fallthru
          _
      $region36: #{tpu_custom_call.1} parent=5 // pred_fallthru
        _
    $region6: #{tpu_custom_call.1} parent=1 // loop_footer
      %s15 = sadd.s32 1, %s11
    $region7: #{tpu_custom_call.1} parent=1 // loop_footer_branch
      %10 = sbr.rel target = $region3
    $region8: #{tpu_custom_call.1} parent=1 // loop_exit
      _
    %1644 = vsyncpa [#allocation3], 1
    %s1645 = scalar_lea.sflag [#allocation3], 1
    %1646 = vsyncpa %s1645, 1

</llo_original>
